<compile_context>
chip_gen: v5e
topology: v5e:2x2
jax: 0.10.0
libtpu: 0.0.40
codegen_flags: <defaults>
</compile_context>

<pallas_src>
import functools

import jax
import jax.numpy as jnp
from jax.experimental import pallas as pl
from jax.experimental.pallas import tpu as pltpu

COMPLEXITY = 2          # `complexity` constructor argument
IMG_SHAPE = (20, 40)    # `img_shape` global used by the reference code
BN_EPS = 1e-5


def _vmem():
    return pl.BlockSpec(memory_space=pltpu.MemorySpace.VMEM)


# --------------------------- Pallas kernels ----------------------------------

def _enc_stage_kernel(act, has_bn, *refs):
    """Fused Conv2d(+bias) -> MaxPool2d(2,(1,2)) -> act -> BatchNorm2d(eval).

    Transposed GEMM layout: weight (Cout, K), patches (K, M), output (Cout, M)
    with M = N*Hp*Wp on the lane dimension (lane-dense loads and stores).
    The four patch operands are the conv evaluated at the four pool taps.
    """
    if has_bn:
        p00, p01, p10, p11, w_ref, b_ref, sc_ref, sh_ref, o_ref = refs
    else:
        p00, p01, p10, p11, w_ref, b_ref, o_ref = refs
    w = w_ref[...]
    z = jnp.dot(w, p00[...], preferred_element_type=jnp.float32)
    z = jnp.maximum(z, jnp.dot(w, p01[...], preferred_element_type=jnp.float32))
    z = jnp.maximum(z, jnp.dot(w, p10[...], preferred_element_type=jnp.float32))
    z = jnp.maximum(z, jnp.dot(w, p11[...], preferred_element_type=jnp.float32))
    z = z + b_ref[...]                    # per-channel bias commutes with max
    if act == "tanh":
        z = jnp.tanh(z)
    elif act == "relu":
        z = jnp.maximum(z, 0.0)
    if has_bn:
        z = z * sc_ref[...] + sh_ref[...]  # folded eval-mode BatchNorm2d
    o_ref[...] = z


def _conv_act_kernel(act, p_ref, w_ref, b_ref, o_ref):
    """Fused Conv2d(+bias) -> optional tanh (decoder stages), transposed GEMM."""
    z = jnp.dot(w_ref[...], p_ref[...], preferred_element_type=jnp.float32)
    z = z + b_ref[...]
    if act == "tanh":
        z = jnp.tanh(z)
    o_ref[...] = z


def _dense_head_kernel(x_ref, w1_ref, b1_ref, w2_ref, b2_ref, o_ref):
    """Fused Linear -> ReLU -> Linear -> log_softmax; hidden stays in VMEM."""
    h = jnp.dot(x_ref[...], w1_ref[...], preferred_element_type=jnp.float32)
    h = jnp.maximum(h + b1_ref[...], 0.0)
    logits = jnp.dot(h, w2_ref[...], preferred_element_type=jnp.float32)
    logits = logits + b2_ref[...]
    s = logits - jnp.max(logits, axis=1, keepdims=True)
    o_ref[...] = s - jnp.log(jnp.sum(jnp.exp(s), axis=1, keepdims=True))


# --------------------------- wrapper glue (XLA, tiny) -------------------------

def _pool_out_hw(hc, wc):
    # nn.MaxPool2d(kernel_size=2, stride=(1, 2)) output size.
    return hc - 1, (wc - 2) // 2 + 1


def _enc_pool_patches_t(x, kh, kw):
    """Transposed im2col for the conv+pool fusion.

    x: (Cin, N, H, W) channel-major activation.
    Returns ([P00, P01, P10, P11], (Hp, Wp)) with
      P_ab[(ci,dh,dw), (n,hp,wp)] = x[ci, n, hp + a + dh, 2*wp + b + dw],
    i.e. conv patches evaluated at the four taps of each pool window.
    """
    cin, n, h, w = x.shape
    hc, wc = h - kh + 1, w - kw + 1
    hp, wp = _pool_out_hw(hc, wc)
    k, m = cin * kh * kw, n * hp * wp
    pats = []
    for a in (0, 1):
        for b in (0, 1):
            taps = [
                x[:, :, a + dh: a + dh + hp, b + dw: b + dw + 2 * wp: 2]
                for dh in range(kh) for dw in range(kw)
            ]
            p = jnp.stack(taps, axis=1)          # (Cin, kh*kw, N, Hp, Wp)
            pats.append(p.reshape(k, m))         # rows (ci,dh,dw), cols (n,hp,wp)
    return pats, (hp, wp)


def _conv_patches_t(x, kh, kw):
    """Transposed im2col for a plain valid conv (decoder stages)."""
    cin, n, h, w = x.shape
    hc, wc = h - kh + 1, w - kw + 1
    taps = [x[:, :, dh: dh + hc, dw: dw + wc]
            for dh in range(kh) for dw in range(kw)]
    p = jnp.stack(taps, axis=1).reshape(cin * kh * kw, n * hc * wc)
    return p, (hc, wc)


def enc_stage(x, w_oihw, b, act, bn=None):
    """Conv2d(valid) + MaxPool2d(2,(1,2)) + act (+ eval BN), one pallas_call.

    x: (Cin, N, H, W) -> (Cout, N, Hp, Wp), channel-major.
    """
    cin, n = x.shape[0], x.shape[1]
    cout, _, kh, kw = w_oihw.shape
    pats, (hp, wp) = _enc_pool_patches_t(x, kh, kw)
    wt = w_oihw.reshape(cout, cin * kh * kw)     # (Cout, K), K ordered (ci,dh,dw)
    args = pats + [wt, b.reshape(cout, 1)]
    if bn is not None:
        gamma, beta, rmean, rvar = bn
        scale = gamma / jnp.sqrt(rvar + BN_EPS)
        shift = beta - rmean * scale
        args += [scale.reshape(cout, 1), shift.reshape(cout, 1)]
    y = pl.pallas_call(
        functools.partial(_enc_stage_kernel, act, bn is not None),
        out_shape=jax.ShapeDtypeStruct((cout, n * hp * wp), jnp.float32),
        in_specs=[_vmem()] * len(args),
        out_specs=_vmem(),
    )(*args)
    return y.reshape(cout, n, hp, wp)


def dec_stage(x, w_oihw, b, act):
    """Upsample(scale=(1,2), nearest) + Conv2d(valid) + act, one pallas_call."""
    cin, n = x.shape[0], x.shape[1]
    cout, _, kh, kw = w_oihw.shape
    up = jnp.repeat(x, 2, axis=3)                # nearest, width x2 (XLA glue)
    p, (hc, wc) = _conv_patches_t(up, kh, kw)
    wt = w_oihw.reshape(cout, cin * kh * kw)
    y = pl.pallas_call(
        functools.partial(_conv_act_kernel, act),
        out_shape=jax.ShapeDtypeStruct((cout, n * hc * wc), jnp.float32),
        in_specs=[_vmem()] * 3,
        out_specs=_vmem(),
    )(p, wt, b.reshape(cout, 1))
    return y.reshape(cout, n, hc, wc)


def dense_head(flat, w1, b1, w2, b2):
    n = flat.shape[0]
    return pl.pallas_call(
        _dense_head_kernel,
        out_shape=jax.ShapeDtypeStruct((n, w2.shape[1]), jnp.float32),
        in_specs=[_vmem()] * 5,
        out_specs=_vmem(),
    )(flat, w1, b1.reshape(1, -1), w2, b2.reshape(1, -1))


def upsample_to(x, out_h, out_w):
    """nn.Upsample(size), nearest: src = floor(dst * src/dst). x: (C,N,H,W)."""
    _, _, h, w = x.shape
    hi = (jnp.arange(out_h) * h) // out_h
    wi = (jnp.arange(out_w) * w) // out_w
    return x[:, :, hi][:, :, :, wi]


# --------------------------- model -------------------------------------------

def _encoder_out_hw(img_shape):
    # mirrors: size = self.conv(torch.zeros(1, 1, H, W)).shape
    h, w = img_shape
    for kk in (5, 3, 3):
        h, w = h - kk + 1, w - kk + 1            # valid conv, stride 1
        h, w = _pool_out_hw(h, w)                # MaxPool2d(2, (1, 2))
    return h, w


def init_params(key, c=COMPLEXITY):
    keys = iter(jax.random.split(key, 32))

    def nrm(shape, scale):
        return scale * jax.random.normal(next(keys), shape, jnp.float32)

    p = {}
    # encoder convs (PyTorch OIHW layout)
    p["w1"], p["b1"] = nrm((c, 1, 5, 5), 0.2), nrm((c,), 0.1)
    p["w2"], p["b2"] = nrm((2 * c, c, 3, 3), 0.2), nrm((2 * c,), 0.1)
    p["w3"], p["b3"] = nrm((4 * c, 2 * c, 3, 3), 0.2), nrm((4 * c,), 0.1)
    # batchnorm parameters + running stats (eval mode)
    for name, ch in (("bn1", c), ("bn2", 2 * c)):
        p[name + "_gamma"] = 1.0 + nrm((ch,), 0.1)
        p[name + "_beta"] = nrm((ch,), 0.1)
        p[name + "_mean"] = nrm((ch,), 0.1)
        p[name + "_var"] = 0.5 + jax.nn.sigmoid(nrm((ch,), 1.0))
    # decoder convs
    p["dw1"], p["db1"] = nrm((2 * c, 4 * c, 3, 3), 0.2), nrm((2 * c,), 0.1)
    p["dw2"], p["db2"] = nrm((c, 2 * c, 3, 3), 0.2), nrm((c,), 0.1)
    p["dw3"], p["db3"] = nrm((1, c, 5, 5), 0.2), nrm((1,), 0.1)
    # dense head; fc weights stored pre-transposed to (in_features, out_features)
    fh, fw = _encoder_out_hw(IMG_SHAPE)
    in_feat = 4 * c * fh * fw
    p["fc1_w"], p["fc1_b"] = nrm((in_feat, 128), 0.1), nrm((128,), 0.1)
    p["fc2_w"], p["fc2_b"] = nrm((128, 3), 0.1), nrm((3,), 0.1)
    return p


def wavelet_autoencoder_forward(params, X):
    """X: (N, 1, H, W) float32 (NCHW). Returns (Y, log_softmax(C, dim=1))."""
    N = X.shape[0]
    x = jnp.transpose(X, (1, 0, 2, 3))           # NCHW -> channel-major (C,N,H,W)

    # ----- encoder (self.conv): 3 fused conv+pool+act(+BN) kernels -----------
    x = enc_stage(x, params["w1"], params["b1"], "tanh",
                  bn=(params["bn1_gamma"], params["bn1_beta"],
                      params["bn1_mean"], params["bn1_var"]))
    x = enc_stage(x, params["w2"], params["b2"], "relu",
                  bn=(params["bn2_gamma"], params["bn2_beta"],
                      params["bn2_mean"], params["bn2_var"]))
    feat = enc_stage(x, params["w3"], params["b3"], "tanh")   # (4c, N, 9, 3)

    # ----- classifier head (self.dense): one fused fc1+relu+fc2+log_softmax --
    flat = jnp.transpose(feat, (1, 0, 2, 3)).reshape(N, -1)   # NCHW-order flatten
    logp = dense_head(flat, params["fc1_w"], params["fc1_b"],
                      params["fc2_w"], params["fc2_b"])

    # ----- decoder (self.deconv): 3 fused upsample+conv(+tanh) kernels -------
    y = dec_stage(feat, params["dw1"], params["db1"], "tanh")
    y = dec_stage(y, params["dw2"], params["db2"], "tanh")
    y = dec_stage(y, params["dw3"], params["db3"], "none")
    y = upsample_to(y, IMG_SHAPE[0], IMG_SHAPE[1])            # (1, N, 20, 40)
    Y = jnp.transpose(y, (1, 0, 2, 3))                        # back to NCHW
    return Y, logp


if __name__ == "__main__":
    key = jax.random.PRNGKey(0)
    pkey, xkey = jax.random.split(key)
    params = init_params(pkey)
    # Input like the PyTorch module: (batch, 1, img_shape[0], img_shape[1]).
    X = jax.random.normal(xkey, (2, 1, IMG_SHAPE[0], IMG_SHAPE[1]), jnp.float32)

    fwd = jax.jit(wavelet_autoencoder_forward)
    Y, logC = fwd(params, X)
    jax.block_until_ready((Y, logC))

    assert Y.shape == (2, 1, IMG_SHAPE[0], IMG_SHAPE[1]), Y.shape
    assert logC.shape == (2, 3), logC.shape
    assert bool(jnp.all(jnp.isfinite(Y))) and bool(jnp.all(jnp.isfinite(logC)))
    print("KERNEL_OK")
</pallas_src>

<mosaic_0001>
module attributes {stable_mosaic.version = 11 : i64} {
  func.func @_enc_stage_kernel(%arg0: memref<25x540xf32, #tpu.memory_space<vmem>>, %arg1: memref<25x540xf32, #tpu.memory_space<vmem>>, %arg2: memref<25x540xf32, #tpu.memory_space<vmem>>, %arg3: memref<25x540xf32, #tpu.memory_space<vmem>>, %arg4: memref<2x25xf32, #tpu.memory_space<vmem>>, %arg5: memref<2x1xf32, #tpu.memory_space<vmem>>, %arg6: memref<2x1xf32, #tpu.memory_space<vmem>>, %arg7: memref<2x1xf32, #tpu.memory_space<vmem>>, %arg8: memref<2x540xf32, #tpu.memory_space<vmem>>) attributes {dimension_semantics = [], scalar_prefetch = 0 : i64, scratch_operands = 0 : i64, tpu.core_type = #tpu.core_type<tc>} {
    %c0 = arith.constant 0 : index
    %c0_0 = arith.constant 0 : index
    %0 = vector.load %arg4[%c0, %c0_0] : memref<2x25xf32, #tpu.memory_space<vmem>>, vector<2x25xf32>
    %c0_1 = arith.constant 0 : index
    %c0_2 = arith.constant 0 : index
    %1 = vector.load %arg0[%c0_1, %c0_2] : memref<25x540xf32, #tpu.memory_space<vmem>>, vector<25x540xf32>
    %cst = arith.constant dense<0.000000e+00> : vector<2x540xf32>
    %2 = tpu.matmul %0, %1, %cst {dimension_numbers = #tpu.dot_dimension_numbers<[1], [0], [0], [1], [0, 0, 1, 1], [], []>} : vector<2x25xf32>, vector<25x540xf32>, vector<2x540xf32> -> vector<2x540xf32>
    %c0_3 = arith.constant 0 : index
    %c0_4 = arith.constant 0 : index
    %3 = vector.load %arg1[%c0_3, %c0_4] : memref<25x540xf32, #tpu.memory_space<vmem>>, vector<25x540xf32>
    %cst_5 = arith.constant dense<0.000000e+00> : vector<2x540xf32>
    %4 = tpu.matmul %0, %3, %cst_5 {dimension_numbers = #tpu.dot_dimension_numbers<[1], [0], [0], [1], [0, 0, 1, 1], [], []>} : vector<2x25xf32>, vector<25x540xf32>, vector<2x540xf32> -> vector<2x540xf32>
    %5 = arith.maximumf %2, %4 : vector<2x540xf32>
    %c0_6 = arith.constant 0 : index
    %c0_7 = arith.constant 0 : index
    %6 = vector.load %arg2[%c0_6, %c0_7] : memref<25x540xf32, #tpu.memory_space<vmem>>, vector<25x540xf32>
    %cst_8 = arith.constant dense<0.000000e+00> : vector<2x540xf32>
    %7 = tpu.matmul %0, %6, %cst_8 {dimension_numbers = #tpu.dot_dimension_numbers<[1], [0], [0], [1], [0, 0, 1, 1], [], []>} : vector<2x25xf32>, vector<25x540xf32>, vector<2x540xf32> -> vector<2x540xf32>
    %8 = arith.maximumf %5, %7 : vector<2x540xf32>
    %c0_9 = arith.constant 0 : index
    %c0_10 = arith.constant 0 : index
    %9 = vector.load %arg3[%c0_9, %c0_10] : memref<25x540xf32, #tpu.memory_space<vmem>>, vector<25x540xf32>
    %cst_11 = arith.constant dense<0.000000e+00> : vector<2x540xf32>
    %10 = tpu.matmul %0, %9, %cst_11 {dimension_numbers = #tpu.dot_dimension_numbers<[1], [0], [0], [1], [0, 0, 1, 1], [], []>} : vector<2x25xf32>, vector<25x540xf32>, vector<2x540xf32> -> vector<2x540xf32>
    %11 = arith.maximumf %8, %10 : vector<2x540xf32>
    %c0_12 = arith.constant 0 : index
    %c0_13 = arith.constant 0 : index
    %12 = vector.load %arg5[%c0_12, %c0_13] : memref<2x1xf32, #tpu.memory_space<vmem>>, vector<2x1xf32>
    %13 = vector.broadcast %12 : vector<2x1xf32> to vector<2x540xf32>
    %14 = arith.addf %11, %13 : vector<2x540xf32>
    %15 = math.tanh %14 : vector<2x540xf32>
    %c0_14 = arith.constant 0 : index
    %c0_15 = arith.constant 0 : index
    %16 = vector.load %arg6[%c0_14, %c0_15] : memref<2x1xf32, #tpu.memory_space<vmem>>, vector<2x1xf32>
    %17 = vector.broadcast %16 : vector<2x1xf32> to vector<2x540xf32>
    %18 = arith.mulf %15, %17 : vector<2x540xf32>
    %c0_16 = arith.constant 0 : index
    %c0_17 = arith.constant 0 : index
    %19 = vector.load %arg7[%c0_16, %c0_17] : memref<2x1xf32, #tpu.memory_space<vmem>>, vector<2x1xf32>
    %20 = vector.broadcast %19 : vector<2x1xf32> to vector<2x540xf32>
    %21 = arith.addf %18, %20 : vector<2x540xf32>
    %c0_18 = arith.constant 0 : index
    %c0_19 = arith.constant 0 : index
    %22 = vector.load %arg8[%c0_18, %c0_19] : memref<2x540xf32, #tpu.memory_space<vmem>>, vector<2x540xf32>
    tpu.vector_store %arg8[%c0_18, %c0_19], %21 {strides = array<i32>} : memref<2x540xf32, #tpu.memory_space<vmem>>, vector<2x540xf32>,
    return
  }
}

module attributes {stable_mosaic.version = 11 : i64} {
  func.func @_enc_stage_kernel(%arg0: memref<18x192xf32, #tpu.memory_space<vmem>>, %arg1: memref<18x192xf32, #tpu.memory_space<vmem>>, %arg2: memref<18x192xf32, #tpu.memory_space<vmem>>, %arg3: memref<18x192xf32, #tpu.memory_space<vmem>>, %arg4: memref<4x18xf32, #tpu.memory_space<vmem>>, %arg5: memref<4x1xf32, #tpu.memory_space<vmem>>, %arg6: memref<4x1xf32, #tpu.memory_space<vmem>>, %arg7: memref<4x1xf32, #tpu.memory_space<vmem>>, %arg8: memref<4x192xf32, #tpu.memory_space<vmem>>) attributes {dimension_semantics = [], scalar_prefetch = 0 : i64, scratch_operands = 0 : i64, tpu.core_type = #tpu.core_type<tc>} {
    %c0 = arith.constant 0 : index
    %c0_0 = arith.constant 0 : index
    %0 = vector.load %arg4[%c0, %c0_0] : memref<4x18xf32, #tpu.memory_space<vmem>>, vector<4x18xf32>
    %c0_1 = arith.constant 0 : index
    %c0_2 = arith.constant 0 : index
    %1 = vector.load %arg0[%c0_1, %c0_2] : memref<18x192xf32, #tpu.memory_space<vmem>>, vector<18x192xf32>
    %cst = arith.constant dense<0.000000e+00> : vector<4x192xf32>
    %2 = tpu.matmul %0, %1, %cst {dimension_numbers = #tpu.dot_dimension_numbers<[1], [0], [0], [1], [0, 0, 1, 1], [], []>} : vector<4x18xf32>, vector<18x192xf32>, vector<4x192xf32> -> vector<4x192xf32>
    %c0_3 = arith.constant 0 : index
    %c0_4 = arith.constant 0 : index
    %3 = vector.load %arg1[%c0_3, %c0_4] : memref<18x192xf32, #tpu.memory_space<vmem>>, vector<18x192xf32>
    %cst_5 = arith.constant dense<0.000000e+00> : vector<4x192xf32>
    %4 = tpu.matmul %0, %3, %cst_5 {dimension_numbers = #tpu.dot_dimension_numbers<[1], [0], [0], [1], [0, 0, 1, 1], [], []>} : vector<4x18xf32>, vector<18x192xf32>, vector<4x192xf32> -> vector<4x192xf32>
    %5 = arith.maximumf %2, %4 : vector<4x192xf32>
    %c0_6 = arith.constant 0 : index
    %c0_7 = arith.constant 0 : index
    %6 = vector.load %arg2[%c0_6, %c0_7] : memref<18x192xf32, #tpu.memory_space<vmem>>, vector<18x192xf32>
    %cst_8 = arith.constant dense<0.000000e+00> : vector<4x192xf32>
    %7 = tpu.matmul %0, %6, %cst_8 {dimension_numbers = #tpu.dot_dimension_numbers<[1], [0], [0], [1], [0, 0, 1, 1], [], []>} : vector<4x18xf32>, vector<18x192xf32>, vector<4x192xf32> -> vector<4x192xf32>
    %8 = arith.maximumf %5, %7 : vector<4x192xf32>
    %c0_9 = arith.constant 0 : index
    %c0_10 = arith.constant 0 : index
    %9 = vector.load %arg3[%c0_9, %c0_10] : memref<18x192xf32, #tpu.memory_space<vmem>>, vector<18x192xf32>
    %cst_11 = arith.constant dense<0.000000e+00> : vector<4x192xf32>
    %10 = tpu.matmul %0, %9, %cst_11 {dimension_numbers = #tpu.dot_dimension_numbers<[1], [0], [0], [1], [0, 0, 1, 1], [], []>} : vector<4x18xf32>, vector<18x192xf32>, vector<4x192xf32> -> vector<4x192xf32>
    %11 = arith.maximumf %8, %10 : vector<4x192xf32>
    %c0_12 = arith.constant 0 : index
    %c0_13 = arith.constant 0 : index
    %12 = vector.load %arg5[%c0_12, %c0_13] : memref<4x1xf32, #tpu.memory_space<vmem>>, vector<4x1xf32>
    %13 = vector.broadcast %12 : vector<4x1xf32> to vector<4x192xf32>
    %14 = arith.addf %11, %13 : vector<4x192xf32>
    %cst_14 = arith.constant 0.000000e+00 : f32
    %15 = vector.broadcast %cst_14 : f32 to vector<4x192xf32>
    %16 = arith.maximumf %14, %15 : vector<4x192xf32>
    %c0_15 = arith.constant 0 : index
    %c0_16 = arith.constant 0 : index
    %17 = vector.load %arg6[%c0_15, %c0_16] : memref<4x1xf32, #tpu.memory_space<vmem>>, vector<4x1xf32>
    %18 = vector.broadcast %17 : vector<4x1xf32> to vector<4x192xf32>
    %19 = arith.mulf %16, %18 : vector<4x192xf32>
    %c0_17 = arith.constant 0 : index
    %c0_18 = arith.constant 0 : index
    %20 = vector.load %arg7[%c0_17, %c0_18] : memref<4x1xf32, #tpu.memory_space<vmem>>, vector<4x1xf32>
    %21 = vector.broadcast %20 : vector<4x1xf32> to vector<4x192xf32>
    %22 = arith.addf %19, %21 : vector<4x192xf32>
    %c0_19 = arith.constant 0 : index
    %c0_20 = arith.constant 0 : index
    %23 = vector.load %arg8[%c0_19, %c0_20] : memref<4x192xf32, #tpu.memory_space<vmem>>, vector<4x192xf32>
    tpu.vector_store %arg8[%c0_19, %c0_20], %22 {strides = array<i32>} : memref<4x192xf32, #tpu.memory_space<vmem>>, vector<4x192xf32>,
    return
  }
}

module attributes {stable_mosaic.version = 11 : i64} {
  func.func @_enc_stage_kernel(%arg0: memref<36x54xf32, #tpu.memory_space<vmem>>, %arg1: memref<36x54xf32, #tpu.memory_space<vmem>>, %arg2: memref<36x54xf32, #tpu.memory_space<vmem>>, %arg3: memref<36x54xf32, #tpu.memory_space<vmem>>, %arg4: memref<8x36xf32, #tpu.memory_space<vmem>>, %arg5: memref<8x1xf32, #tpu.memory_space<vmem>>, %arg6: memref<8x54xf32, #tpu.memory_space<vmem>>) attributes {dimension_semantics = [], scalar_prefetch = 0 : i64, scratch_operands = 0 : i64, tpu.core_type = #tpu.core_type<tc>} {
    %c0 = arith.constant 0 : index
    %c0_0 = arith.constant 0 : index
    %0 = vector.load %arg4[%c0, %c0_0] : memref<8x36xf32, #tpu.memory_space<vmem>>, vector<8x36xf32>
    %c0_1 = arith.constant 0 : index
    %c0_2 = arith.constant 0 : index
    %1 = vector.load %arg0[%c0_1, %c0_2] : memref<36x54xf32, #tpu.memory_space<vmem>>, vector<36x54xf32>
    %cst = arith.constant dense<0.000000e+00> : vector<8x54xf32>
    %2 = tpu.matmul %0, %1, %cst {dimension_numbers = #tpu.dot_dimension_numbers<[1], [0], [0], [1], [0, 0, 1, 1], [], []>} : vector<8x36xf32>, vector<36x54xf32>, vector<8x54xf32> -> vector<8x54xf32>
    %c0_3 = arith.constant 0 : index
    %c0_4 = arith.constant 0 : index
    %3 = vector.load %arg1[%c0_3, %c0_4] : memref<36x54xf32, #tpu.memory_space<vmem>>, vector<36x54xf32>
    %cst_5 = arith.constant dense<0.000000e+00> : vector<8x54xf32>
    %4 = tpu.matmul %0, %3, %cst_5 {dimension_numbers = #tpu.dot_dimension_numbers<[1], [0], [0], [1], [0, 0, 1, 1], [], []>} : vector<8x36xf32>, vector<36x54xf32>, vector<8x54xf32> -> vector<8x54xf32>
    %5 = arith.maximumf %2, %4 : vector<8x54xf32>
    %c0_6 = arith.constant 0 : index
    %c0_7 = arith.constant 0 : index
    %6 = vector.load %arg2[%c0_6, %c0_7] : memref<36x54xf32, #tpu.memory_space<vmem>>, vector<36x54xf32>
    %cst_8 = arith.constant dense<0.000000e+00> : vector<8x54xf32>
    %7 = tpu.matmul %0, %6, %cst_8 {dimension_numbers = #tpu.dot_dimension_numbers<[1], [0], [0], [1], [0, 0, 1, 1], [], []>} : vector<8x36xf32>, vector<36x54xf32>, vector<8x54xf32> -> vector<8x54xf32>
    %8 = arith.maximumf %5, %7 : vector<8x54xf32>
    %c0_9 = arith.constant 0 : index
    %c0_10 = arith.constant 0 : index
    %9 = vector.load %arg3[%c0_9, %c0_10] : memref<36x54xf32, #tpu.memory_space<vmem>>, vector<36x54xf32>
    %cst_11 = arith.constant dense<0.000000e+00> : vector<8x54xf32>
    %10 = tpu.matmul %0, %9, %cst_11 {dimension_numbers = #tpu.dot_dimension_numbers<[1], [0], [0], [1], [0, 0, 1, 1], [], []>} : vector<8x36xf32>, vector<36x54xf32>, vector<8x54xf32> -> vector<8x54xf32>
    %11 = arith.maximumf %8, %10 : vector<8x54xf32>
    %c0_12 = arith.constant 0 : index
    %c0_13 = arith.constant 0 : index
    %12 = vector.load %arg5[%c0_12, %c0_13] : memref<8x1xf32, #tpu.memory_space<vmem>>, vector<8x1xf32>
    %13 = vector.broadcast %12 : vector<8x1xf32> to vector<8x54xf32>
    %14 = arith.addf %11, %13 : vector<8x54xf32>
    %15 = math.tanh %14 : vector<8x54xf32>
    %c0_14 = arith.constant 0 : index
    %c0_15 = arith.constant 0 : index
    %16 = vector.load %arg6[%c0_14, %c0_15] : memref<8x54xf32, #tpu.memory_space<vmem>>, vector<8x54xf32>
    tpu.vector_store %arg6[%c0_14, %c0_15], %15 {strides = array<i32>} : memref<8x54xf32, #tpu.memory_space<vmem>>, vector<8x54xf32>,
    return
  }
}

module attributes {stable_mosaic.version = 11 : i64} {
  func.func @_conv_act_kernel(%arg0: memref<72x56xf32, #tpu.memory_space<vmem>>, %arg1: memref<4x72xf32, #tpu.memory_space<vmem>>, %arg2: memref<4x1xf32, #tpu.memory_space<vmem>>, %arg3: memref<4x56xf32, #tpu.memory_space<vmem>>) attributes {dimension_semantics = [], scalar_prefetch = 0 : i64, scratch_operands = 0 : i64, tpu.core_type = #tpu.core_type<tc>} {
    %c0 = arith.constant 0 : index
    %c0_0 = arith.constant 0 : index
    %0 = vector.load %arg1[%c0, %c0_0] : memref<4x72xf32, #tpu.memory_space<vmem>>, vector<4x72xf32>
    %c0_1 = arith.constant 0 : index
    %c0_2 = arith.constant 0 : index
    %1 = vector.load %arg0[%c0_1, %c0_2] : memref<72x56xf32, #tpu.memory_space<vmem>>, vector<72x56xf32>
    %cst = arith.constant dense<0.000000e+00> : vector<4x56xf32>
    %2 = tpu.matmul %0, %1, %cst {dimension_numbers = #tpu.dot_dimension_numbers<[1], [0], [0], [1], [0, 0, 1, 1], [], []>} : vector<4x72xf32>, vector<72x56xf32>, vector<4x56xf32> -> vector<4x56xf32>
    %c0_3 = arith.constant 0 : index
    %c0_4 = arith.constant 0 : index
    %3 = vector.load %arg2[%c0_3, %c0_4] : memref<4x1xf32, #tpu.memory_space<vmem>>, vector<4x1xf32>
    %4 = vector.broadcast %3 : vector<4x1xf32> to vector<4x56xf32>
    %5 = arith.addf %2, %4 : vector<4x56xf32>
    %6 = math.tanh %5 : vector<4x56xf32>
    %c0_5 = arith.constant 0 : index
    %c0_6 = arith.constant 0 : index
    %7 = vector.load %arg3[%c0_5, %c0_6] : memref<4x56xf32, #tpu.memory_space<vmem>>, vector<4x56xf32>
    tpu.vector_store %arg3[%c0_5, %c0_6], %6 {strides = array<i32>} : memref<4x56xf32, #tpu.memory_space<vmem>>, vector<4x56xf32>,
    return
  }
}

module attributes {stable_mosaic.version = 11 : i64} {
  func.func @_conv_act_kernel(%arg0: memref<36x60xf32, #tpu.memory_space<vmem>>, %arg1: memref<2x36xf32, #tpu.memory_space<vmem>>, %arg2: memref<2x1xf32, #tpu.memory_space<vmem>>, %arg3: memref<2x60xf32, #tpu.memory_space<vmem>>) attributes {dimension_semantics = [], scalar_prefetch = 0 : i64, scratch_operands = 0 : i64, tpu.core_type = #tpu.core_type<tc>} {
    %c0 = arith.constant 0 : index
    %c0_0 = arith.constant 0 : index
    %0 = vector.load %arg1[%c0, %c0_0] : memref<2x36xf32, #tpu.memory_space<vmem>>, vector<2x36xf32>
    %c0_1 = arith.constant 0 : index
    %c0_2 = arith.constant 0 : index
    %1 = vector.load %arg0[%c0_1, %c0_2] : memref<36x60xf32, #tpu.memory_space<vmem>>, vector<36x60xf32>
    %cst = arith.constant dense<0.000000e+00> : vector<2x60xf32>
    %2 = tpu.matmul %0, %1, %cst {dimension_numbers = #tpu.dot_dimension_numbers<[1], [0], [0], [1], [0, 0, 1, 1], [], []>} : vector<2x36xf32>, vector<36x60xf32>, vector<2x60xf32> -> vector<2x60xf32>
    %c0_3 = arith.constant 0 : index
    %c0_4 = arith.constant 0 : index
    %3 = vector.load %arg2[%c0_3, %c0_4] : memref<2x1xf32, #tpu.memory_space<vmem>>, vector<2x1xf32>
    %4 = vector.broadcast %3 : vector<2x1xf32> to vector<2x60xf32>
    %5 = arith.addf %2, %4 : vector<2x60xf32>
    %6 = math.tanh %5 : vector<2x60xf32>
    %c0_5 = arith.constant 0 : index
    %c0_6 = arith.constant 0 : index
    %7 = vector.load %arg3[%c0_5, %c0_6] : memref<2x60xf32, #tpu.memory_space<vmem>>, vector<2x60xf32>
    tpu.vector_store %arg3[%c0_5, %c0_6], %6 {strides = array<i32>} : memref<2x60xf32, #tpu.memory_space<vmem>>, vector<2x60xf32>,
    return
  }
}

module attributes {stable_mosaic.version = 11 : i64} {
  func.func @_conv_act_kernel(%arg0: memref<50x16xf32, #tpu.memory_space<vmem>>, %arg1: memref<1x50xf32, #tpu.memory_space<vmem>>, %arg2: memref<1x1xf32, #tpu.memory_space<vmem>>, %arg3: memref<1x16xf32, #tpu.memory_space<vmem>>) attributes {dimension_semantics = [], scalar_prefetch = 0 : i64, scratch_operands = 0 : i64, tpu.core_type = #tpu.core_type<tc>} {
    %c0 = arith.constant 0 : index
    %c0_0 = arith.constant 0 : index
    %0 = vector.load %arg1[%c0, %c0_0] : memref<1x50xf32, #tpu.memory_space<vmem>>, vector<1x50xf32>
    %c0_1 = arith.constant 0 : index
    %c0_2 = arith.constant 0 : index
    %1 = vector.load %arg0[%c0_1, %c0_2] : memref<50x16xf32, #tpu.memory_space<vmem>>, vector<50x16xf32>
    %cst = arith.constant dense<0.000000e+00> : vector<1x16xf32>
    %2 = tpu.matmul %0, %1, %cst {dimension_numbers = #tpu.dot_dimension_numbers<[1], [0], [0], [1], [0, 0, 1, 1], [], []>} : vector<1x50xf32>, vector<50x16xf32>, vector<1x16xf32> -> vector<1x16xf32>
    %c0_3 = arith.constant 0 : index
    %c0_4 = arith.constant 0 : index
    %3 = vector.load %arg2[%c0_3, %c0_4] : memref<1x1xf32, #tpu.memory_space<vmem>>, vector<1x1xf32>
    %4 = vector.broadcast %3 : vector<1x1xf32> to vector<1x16xf32>
    %5 = arith.addf %2, %4 : vector<1x16xf32>
    %c0_5 = arith.constant 0 : index
    %c0_6 = arith.constant 0 : index
    %6 = vector.load %arg3[%c0_5, %c0_6] : memref<1x16xf32, #tpu.memory_space<vmem>>, vector<1x16xf32>
    tpu.vector_store %arg3[%c0_5, %c0_6], %5 {strides = array<i32>} : memref<1x16xf32, #tpu.memory_space<vmem>>, vector<1x16xf32>,
    return
  }
}

module attributes {stable_mosaic.version = 11 : i64} {
  func.func @_dense_head_kernel(%arg0: memref<2x216xf32, #tpu.memory_space<vmem>>, %arg1: memref<216x128xf32, #tpu.memory_space<vmem>>, %arg2: memref<1x128xf32, #tpu.memory_space<vmem>>, %arg3: memref<128x3xf32, #tpu.memory_space<vmem>>, %arg4: memref<1x3xf32, #tpu.memory_space<vmem>>, %arg5: memref<2x3xf32, #tpu.memory_space<vmem>>) attributes {dimension_semantics = [], scalar_prefetch = 0 : i64, scratch_operands = 0 : i64, tpu.core_type = #tpu.core_type<tc>} {
    %c0 = arith.constant 0 : index
    %c0_0 = arith.constant 0 : index
    %0 = vector.load %arg0[%c0, %c0_0] : memref<2x216xf32, #tpu.memory_space<vmem>>, vector<2x216xf32>
    %c0_1 = arith.constant 0 : index
    %c0_2 = arith.constant 0 : index
    %1 = vector.load %arg1[%c0_1, %c0_2] : memref<216x128xf32, #tpu.memory_space<vmem>>, vector<216x128xf32>
    %cst = arith.constant dense<0.000000e+00> : vector<2x128xf32>
    %2 = tpu.matmul %0, %1, %cst {dimension_numbers = #tpu.dot_dimension_numbers<[1], [0], [0], [1], [0, 0, 1, 1], [], []>} : vector<2x216xf32>, vector<216x128xf32>, vector<2x128xf32> -> vector<2x128xf32>
    %c0_3 = arith.constant 0 : index
    %c0_4 = arith.constant 0 : index
    %3 = vector.load %arg2[%c0_3, %c0_4] : memref<1x128xf32, #tpu.memory_space<vmem>>, vector<1x128xf32>
    %4 = vector.broadcast %3 : vector<1x128xf32> to vector<2x128xf32>
    %5 = arith.addf %2, %4 : vector<2x128xf32>
    %cst_5 = arith.constant 0.000000e+00 : f32
    %6 = vector.broadcast %cst_5 : f32 to vector<2x128xf32>
    %7 = arith.maximumf %5, %6 : vector<2x128xf32>
    %c0_6 = arith.constant 0 : index
    %c0_7 = arith.constant 0 : index
    %8 = vector.load %arg3[%c0_6, %c0_7] : memref<128x3xf32, #tpu.memory_space<vmem>>, vector<128x3xf32>
    %cst_8 = arith.constant dense<0.000000e+00> : vector<2x3xf32>
    %9 = tpu.matmul %7, %8, %cst_8 {dimension_numbers = #tpu.dot_dimension_numbers<[1], [0], [0], [1], [0, 0, 1, 1], [], []>} : vector<2x128xf32>, vector<128x3xf32>, vector<2x3xf32> -> vector<2x3xf32>
    %c0_9 = arith.constant 0 : index
    %c0_10 = arith.constant 0 : index
    %10 = vector.load %arg4[%c0_9, %c0_10] : memref<1x3xf32, #tpu.memory_space<vmem>>, vector<1x3xf32>
    %11 = vector.broadcast %10 : vector<1x3xf32> to vector<2x3xf32>
    %12 = arith.addf %9, %11 : vector<2x3xf32>
    %cst_11 = arith.constant dense<0xFF800000> : vector<2xf32>
    %13 = vector.multi_reduction <maximumf>, %12, %cst_11 [1] : vector<2x3xf32> to vector<2xf32>
    %14 = vector.shape_cast %13 : vector<2xf32> to vector<2x1xf32>
    %15 = vector.broadcast %14 : vector<2x1xf32> to vector<2x3xf32>
    %16 = arith.subf %12, %15 : vector<2x3xf32>
    %17 = math.exp %16 : vector<2x3xf32>
    %cst_12 = arith.constant dense<0.000000e+00> : vector<2xf32>
    %18 = vector.multi_reduction <add>, %17, %cst_12 [1] : vector<2x3xf32> to vector<2xf32>
    %19 = vector.shape_cast %18 : vector<2xf32> to vector<2x1xf32>
    %20 = math.log %19 : vector<2x1xf32>
    %21 = vector.broadcast %20 : vector<2x1xf32> to vector<2x3xf32>
    %22 = arith.subf %16, %21 : vector<2x3xf32>
    %c0_13 = arith.constant 0 : index
    %c0_14 = arith.constant 0 : index
    %23 = vector.load %arg5[%c0_13, %c0_14] : memref<2x3xf32, #tpu.memory_space<vmem>>, vector<2x3xf32>
    tpu.vector_store %arg5[%c0_13, %c0_14], %22 {strides = array<i32>} : memref<2x3xf32, #tpu.memory_space<vmem>>, vector<2x3xf32>,
    return
  }
}

</mosaic_0001>

<llo_original>
// kernel: wavelet_autoencoder_forward.7
$region0: #{wavelet_autoencoder_forward.7}
  #allocation0 [shape = 'u32[]', space=smem, size = 0x4, offset = 0x4, fixed_abs, tag = 'smem constant byte address 0x4 - core index']
  #allocation1 [shape = 'u32[72,128]{1,0:T(1,128)}', space=vmem, size = 0x9000, scoped, tag = 'internal scratch']
  %s0 = inlined_call_operand.vmem [shape: f32[25,540], index: 0, kind: input, shape index: {}]
  %s1 = inlined_call_operand.vmem [shape: f32[25,540], index: 1, kind: input, shape index: {}]
  %s2 = inlined_call_operand.vmem [shape: f32[25,540], index: 2, kind: input, shape index: {}]
  %s3 = inlined_call_operand.vmem [shape: f32[25,540], index: 3, kind: input, shape index: {}]
  %s4 = inlined_call_operand.vmem [shape: f32[2,25], index: 4, kind: input, shape index: {}]
  %s5 = inlined_call_operand.vmem [shape: f32[2,1], index: 5, kind: input, shape index: {}]
  %s6 = inlined_call_operand.vmem [shape: f32[2,1], index: 6, kind: input, shape index: {}]
  %s7 = inlined_call_operand.vmem [shape: f32[2,1], index: 7, kind: input, shape index: {}]
  %s8 = inlined_call_operand.vmem [shape: f32[2,540], index: 8, kind: output, shape index: {}]
  %s9 = sld [smem:[#allocation0]]
  $region42: #{wavelet_autoencoder_forward.7} parent=0
    _
  %s11 = ssub.s32 1, %s9
  %s12 = scalar_select 0, %s11, %s9
  // Predicated region
  $region2: #{wavelet_autoencoder_forward.7} parent=0 // pred_check
    _
  $region3: #{wavelet_autoencoder_forward.7} parent=0 // pred_check_branch
    %14 = sbr.rel (0) target = $region5
  $region4: #{wavelet_autoencoder_forward.7} parent=0 // pred_region
    _
  $region5: #{wavelet_autoencoder_forward.7} parent=0 // pred_fallthru
    _
  // Predicated region
  $region6: #{wavelet_autoencoder_forward.7} parent=0 // pred_check
    _
  $region7: #{wavelet_autoencoder_forward.7} parent=0 // pred_check_branch
    %16 = sbr.rel (0) target = $region9
  $region8: #{wavelet_autoencoder_forward.7} parent=0 // pred_region
    _
  $region9: #{wavelet_autoencoder_forward.7} parent=0 // pred_fallthru
    _
  // Predicated region
  $region10: #{wavelet_autoencoder_forward.7} parent=0 // pred_check
    _
  $region11: #{wavelet_autoencoder_forward.7} parent=0 // pred_check_branch
    %18 = sbr.rel (0) target = $region13
  $region12: #{wavelet_autoencoder_forward.7} parent=0 // pred_region
    _
  $region13: #{wavelet_autoencoder_forward.7} parent=0 // pred_fallthru
    _
  // Predicated region
  $region14: #{wavelet_autoencoder_forward.7} parent=0 // pred_check
    _
  $region15: #{wavelet_autoencoder_forward.7} parent=0 // pred_check_branch
    %20 = sbr.rel (0) target = $region17
  $region16: #{wavelet_autoencoder_forward.7} parent=0 // pred_region
    _
  $region17: #{wavelet_autoencoder_forward.7} parent=0 // pred_fallthru
    _
  // Predicated region
  $region18: #{wavelet_autoencoder_forward.7} parent=0 // pred_check
    _
  $region19: #{wavelet_autoencoder_forward.7} parent=0 // pred_check_branch
    %22 = sbr.rel (0) target = $region21
  $region20: #{wavelet_autoencoder_forward.7} parent=0 // pred_region
    _
  $region21: #{wavelet_autoencoder_forward.7} parent=0 // pred_fallthru
    _
  // Predicated region
  $region22: #{wavelet_autoencoder_forward.7} parent=0 // pred_check
    _
  $region23: #{wavelet_autoencoder_forward.7} parent=0 // pred_check_branch
    %24 = sbr.rel (0) target = $region25
  $region24: #{wavelet_autoencoder_forward.7} parent=0 // pred_region
    _
  $region25: #{wavelet_autoencoder_forward.7} parent=0 // pred_fallthru
    _
  // Predicated region
  $region26: #{wavelet_autoencoder_forward.7} parent=0 // pred_check
    _
  $region27: #{wavelet_autoencoder_forward.7} parent=0 // pred_check_branch
    %26 = sbr.rel (0) target = $region29
  $region28: #{wavelet_autoencoder_forward.7} parent=0 // pred_region
    _
  $region29: #{wavelet_autoencoder_forward.7} parent=0 // pred_fallthru
    _
  // Predicated region
  $region30: #{wavelet_autoencoder_forward.7} parent=0 // pred_check
    _
  $region31: #{wavelet_autoencoder_forward.7} parent=0 // pred_check_branch
    %28 = sbr.rel (0) target = $region33
  $region32: #{wavelet_autoencoder_forward.7} parent=0 // pred_region
    _
  $region33: #{wavelet_autoencoder_forward.7} parent=0 // pred_fallthru
    _
  %v29 = vld [vmem:[%s4] sm:$0x3]
  %v30 = vld [vmem:[%s0] sm:$0xff]
  %v31 = vld [vmem:[%s0 + $0x8] sm:$0xff]
  %v32 = vld [vmem:[%s0 + $0x10] sm:$0xff]
  %v33 = vld [vmem:[%s0 + $0x18] sm:$0xff]
  %v34 = vld [vmem:[%s0 + $0x20] sm:$0xff]
  %v35 = vld [vmem:[%s0 + $0x28] sm:$0xff]
  %v36 = vld [vmem:[%s0 + $0x30] sm:$0xff]
  %v37 = vld [vmem:[%s0 + $0x38] sm:$0xff]
  %v38 = vld [vmem:[%s0 + $0x40] sm:$0xff]
  %v39 = vld [vmem:[%s0 + $0x48] sm:$0xff]
  %v40 = vld [vmem:[%s0 + $0x50] sm:$0xff]
  %v41 = vld [vmem:[%s0 + $0x58] sm:$0xff]
  %v42 = vld [vmem:[%s0 + $0x60] sm:$0xff]
  %v43 = vld [vmem:[%s0 + $0x68] sm:$0xff]
  %v44 = vld [vmem:[%s0 + $0x70] sm:$0xff]
  %v45 = vld [vmem:[%s0 + $0x78] sm:$0x1]
  %v46 = vld [vmem:[%s0 + $0x80] sm:$0x1]
  %v47 = vld [vmem:[%s0 + $0x88] sm:$0x1]
  %v48 = vld [vmem:[%s0 + $0x90] sm:$0x1]
  %v49 = vld [vmem:[%s0 + $0x98] sm:$0x1]
  %vm50 = vcmask 203776
  %v52 = vsel %vm50, %v29, 0
  %vm54 = vcmask 1040384
  %v56 = vsel %vm54, %v45, 0
  %v59 = vsel %vm54, %v46, 0
  %v62 = vsel %vm54, %v47, 0
  %v65 = vsel %vm54, %v48, 0
  %v68 = vsel %vm54, %v49, 0
  %70 = vmatpush.msra.mxu0 0.0
  %71 = vmatpush.msra.mxu0 0.0
  %72 = vmatpush.msra.mxu0 0.0
  %73 = vmatpush.msra.mxu0 0.0
  %74 = vmatpush.msra.mxu0 0.0
  %75 = vmatpush.msra.mxu0 0.0
  %76 = vmatpush.msra.mxu0 0.0
  %77 = vmatpush.msra.mxu0 0.0
  %78 = vmatpush.msra.mxu0 0.0
  %79 = vmatpush.msra.mxu0 0.0
  %80 = vmatpush.msra.mxu0 0.0
  %81 = vmatpush.msra.mxu0 0.0
  %82 = vmatpush.msra.mxu0 %v56
  %83 = vmatpush.msra.mxu0 %v40
  %84 = vmatpush.msra.mxu0 %v35
  %85 = vmatpush.msra.mxu0 %v30
  %86 = vmatmul.f32.gmra.mxu0 %v52
  %v87 = vpop.f32.mrf.mxu0
  %v88 = vadd.f32 0.0, %v87
  %89 = vdwg.mxu0
  %90 = vmatpush.msra.mxu0 0.0
  %91 = vmatpush.msra.mxu0 0.0
  %92 = vmatpush.msra.mxu0 0.0
  %93 = vmatpush.msra.mxu0 0.0
  %94 = vmatpush.msra.mxu0 0.0
  %95 = vmatpush.msra.mxu0 0.0
  %96 = vmatpush.msra.mxu0 0.0
  %97 = vmatpush.msra.mxu0 0.0
  %98 = vmatpush.msra.mxu0 0.0
  %99 = vmatpush.msra.mxu0 0.0
  %100 = vmatpush.msra.mxu0 0.0
  %101 = vmatpush.msra.mxu0 0.0
  %102 = vmatpush.msra.mxu0 %v59
  %103 = vmatpush.msra.mxu0 %v41
  %104 = vmatpush.msra.mxu0 %v36
  %105 = vmatpush.msra.mxu0 %v31
  %106 = vmatmul.f32.gmra.mxu0 %v52
  %v107 = vpop.f32.mrf.mxu0
  %v108 = vadd.f32 0.0, %v107
  %109 = vdwg.mxu0
  %110 = vmatpush.msra.mxu0 0.0
  %111 = vmatpush.msra.mxu0 0.0
  %112 = vmatpush.msra.mxu0 0.0
  %113 = vmatpush.msra.mxu0 0.0
  %114 = vmatpush.msra.mxu0 0.0
  %115 = vmatpush.msra.mxu0 0.0
  %116 = vmatpush.msra.mxu0 0.0
  %117 = vmatpush.msra.mxu0 0.0
  %118 = vmatpush.msra.mxu0 0.0
  %119 = vmatpush.msra.mxu0 0.0
  %120 = vmatpush.msra.mxu0 0.0
  %121 = vmatpush.msra.mxu0 0.0
  %122 = vmatpush.msra.mxu0 %v62
  %123 = vmatpush.msra.mxu0 %v42
  %124 = vmatpush.msra.mxu0 %v37
  %125 = vmatpush.msra.mxu0 %v32
  %126 = vmatmul.f32.gmra.mxu0 %v52
  %v127 = vpop.f32.mrf.mxu0
  %v128 = vadd.f32 0.0, %v127
  %129 = vdwg.mxu0
  %130 = vmatpush.msra.mxu0 0.0
  %131 = vmatpush.msra.mxu0 0.0
  %132 = vmatpush.msra.mxu0 0.0
  %133 = vmatpush.msra.mxu0 0.0
  %134 = vmatpush.msra.mxu0 0.0
  %135 = vmatpush.msra.mxu0 0.0
  %136 = vmatpush.msra.mxu0 0.0
  %137 = vmatpush.msra.mxu0 0.0
  %138 = vmatpush.msra.mxu0 0.0
  %139 = vmatpush.msra.mxu0 0.0
  %140 = vmatpush.msra.mxu0 0.0
  %141 = vmatpush.msra.mxu0 0.0
  %142 = vmatpush.msra.mxu0 %v65
  %143 = vmatpush.msra.mxu0 %v43
  %144 = vmatpush.msra.mxu0 %v38
  %145 = vmatpush.msra.mxu0 %v33
  %146 = vmatmul.f32.gmra.mxu0 %v52
  %v147 = vpop.f32.mrf.mxu0
  %v148 = vadd.f32 0.0, %v147
  %149 = vdwg.mxu0
  %150 = vmatpush.msra.mxu0 0.0
  %151 = vmatpush.msra.mxu0 0.0
  %152 = vmatpush.msra.mxu0 0.0
  %153 = vmatpush.msra.mxu0 0.0
  %154 = vmatpush.msra.mxu0 0.0
  %155 = vmatpush.msra.mxu0 0.0
  %156 = vmatpush.msra.mxu0 0.0
  %157 = vmatpush.msra.mxu0 0.0
  %158 = vmatpush.msra.mxu0 0.0
  %159 = vmatpush.msra.mxu0 0.0
  %160 = vmatpush.msra.mxu0 0.0
  %161 = vmatpush.msra.mxu0 0.0
  %162 = vmatpush.msra.mxu0 %v68
  %163 = vmatpush.msra.mxu0 %v44
  %164 = vmatpush.msra.mxu0 %v39
  %165 = vmatpush.msra.mxu0 %v34
  %166 = vmatmul.f32.gmra.mxu0 %v52
  %v167 = vpop.f32.mrf.mxu0
  %v168 = vadd.f32 0.0, %v167
  %169 = vdwg.mxu0
  %v170 = vld [vmem:[%s1] sm:$0xff]
  %v171 = vld [vmem:[%s1 + $0x8] sm:$0xff]
  %v172 = vld [vmem:[%s1 + $0x10] sm:$0xff]
  %v173 = vld [vmem:[%s1 + $0x18] sm:$0xff]
  %v174 = vld [vmem:[%s1 + $0x20] sm:$0xff]
  %v175 = vld [vmem:[%s1 + $0x28] sm:$0xff]
  %v176 = vld [vmem:[%s1 + $0x30] sm:$0xff]
  %v177 = vld [vmem:[%s1 + $0x38] sm:$0xff]
  %v178 = vld [vmem:[%s1 + $0x40] sm:$0xff]
  %v179 = vld [vmem:[%s1 + $0x48] sm:$0xff]
  %v180 = vld [vmem:[%s1 + $0x50] sm:$0xff]
  %v181 = vld [vmem:[%s1 + $0x58] sm:$0xff]
  %v182 = vld [vmem:[%s1 + $0x60] sm:$0xff]
  %v183 = vld [vmem:[%s1 + $0x68] sm:$0xff]
  %v184 = vld [vmem:[%s1 + $0x70] sm:$0xff]
  %v185 = vld [vmem:[%s1 + $0x78] sm:$0x1]
  %v186 = vld [vmem:[%s1 + $0x80] sm:$0x1]
  %v187 = vld [vmem:[%s1 + $0x88] sm:$0x1]
  %v188 = vld [vmem:[%s1 + $0x90] sm:$0x1]
  %v189 = vld [vmem:[%s1 + $0x98] sm:$0x1]
  %v191 = vsel %vm54, %v185, 0
  %v194 = vsel %vm54, %v186, 0
  %v197 = vsel %vm54, %v187, 0
  %v200 = vsel %vm54, %v188, 0
  %v203 = vsel %vm54, %v189, 0
  %205 = vmatpush.msra.mxu0 0.0
  %206 = vmatpush.msra.mxu0 0.0
  %207 = vmatpush.msra.mxu0 0.0
  %208 = vmatpush.msra.mxu0 0.0
  %209 = vmatpush.msra.mxu0 0.0
  %210 = vmatpush.msra.mxu0 0.0
  %211 = vmatpush.msra.mxu0 0.0
  %212 = vmatpush.msra.mxu0 0.0
  %213 = vmatpush.msra.mxu0 0.0
  %214 = vmatpush.msra.mxu0 0.0
  %215 = vmatpush.msra.mxu0 0.0
  %216 = vmatpush.msra.mxu0 0.0
  %217 = vmatpush.msra.mxu0 %v191
  %218 = vmatpush.msra.mxu0 %v180
  %219 = vmatpush.msra.mxu0 %v175
  %220 = vmatpush.msra.mxu0 %v170
  %221 = vmatmul.f32.gmra.mxu0 %v52
  %v222 = vpop.f32.mrf.mxu0
  %v223 = vadd.f32 0.0, %v222
  %224 = vdwg.mxu0
  %225 = vmatpush.msra.mxu0 0.0
  %226 = vmatpush.msra.mxu0 0.0
  %227 = vmatpush.msra.mxu0 0.0
  %228 = vmatpush.msra.mxu0 0.0
  %229 = vmatpush.msra.mxu0 0.0
  %230 = vmatpush.msra.mxu0 0.0
  %231 = vmatpush.msra.mxu0 0.0
  %232 = vmatpush.msra.mxu0 0.0
  %233 = vmatpush.msra.mxu0 0.0
  %234 = vmatpush.msra.mxu0 0.0
  %235 = vmatpush.msra.mxu0 0.0
  %236 = vmatpush.msra.mxu0 0.0
  %237 = vmatpush.msra.mxu0 %v194
  %238 = vmatpush.msra.mxu0 %v181
  %239 = vmatpush.msra.mxu0 %v176
  %240 = vmatpush.msra.mxu0 %v171
  %241 = vmatmul.f32.gmra.mxu0 %v52
  %v242 = vpop.f32.mrf.mxu0
  %v243 = vadd.f32 0.0, %v242
  %244 = vdwg.mxu0
  %245 = vmatpush.msra.mxu0 0.0
  %246 = vmatpush.msra.mxu0 0.0
  %247 = vmatpush.msra.mxu0 0.0
  %248 = vmatpush.msra.mxu0 0.0
  %249 = vmatpush.msra.mxu0 0.0
  %250 = vmatpush.msra.mxu0 0.0
  %251 = vmatpush.msra.mxu0 0.0
  %252 = vmatpush.msra.mxu0 0.0
  %253 = vmatpush.msra.mxu0 0.0
  %254 = vmatpush.msra.mxu0 0.0
  %255 = vmatpush.msra.mxu0 0.0
  %256 = vmatpush.msra.mxu0 0.0
  %257 = vmatpush.msra.mxu0 %v197
  %258 = vmatpush.msra.mxu0 %v182
  %259 = vmatpush.msra.mxu0 %v177
  %260 = vmatpush.msra.mxu0 %v172
  %261 = vmatmul.f32.gmra.mxu0 %v52
  %v262 = vpop.f32.mrf.mxu0
  %v263 = vadd.f32 0.0, %v262
  %264 = vdwg.mxu0
  %265 = vmatpush.msra.mxu0 0.0
  %266 = vmatpush.msra.mxu0 0.0
  %267 = vmatpush.msra.mxu0 0.0
  %268 = vmatpush.msra.mxu0 0.0
  %269 = vmatpush.msra.mxu0 0.0
  %270 = vmatpush.msra.mxu0 0.0
  %271 = vmatpush.msra.mxu0 0.0
  %272 = vmatpush.msra.mxu0 0.0
  %273 = vmatpush.msra.mxu0 0.0
  %274 = vmatpush.msra.mxu0 0.0
  %275 = vmatpush.msra.mxu0 0.0
  %276 = vmatpush.msra.mxu0 0.0
  %277 = vmatpush.msra.mxu0 %v200
  %278 = vmatpush.msra.mxu0 %v183
  %279 = vmatpush.msra.mxu0 %v178
  %280 = vmatpush.msra.mxu0 %v173
  %281 = vmatmul.f32.gmra.mxu0 %v52
  %v282 = vpop.f32.mrf.mxu0
  %v283 = vadd.f32 0.0, %v282
  %284 = vdwg.mxu0
  %285 = vmatpush.msra.mxu0 0.0
  %286 = vmatpush.msra.mxu0 0.0
  %287 = vmatpush.msra.mxu0 0.0
  %288 = vmatpush.msra.mxu0 0.0
  %289 = vmatpush.msra.mxu0 0.0
  %290 = vmatpush.msra.mxu0 0.0
  %291 = vmatpush.msra.mxu0 0.0
  %292 = vmatpush.msra.mxu0 0.0
  %293 = vmatpush.msra.mxu0 0.0
  %294 = vmatpush.msra.mxu0 0.0
  %295 = vmatpush.msra.mxu0 0.0
  %296 = vmatpush.msra.mxu0 0.0
  %297 = vmatpush.msra.mxu0 %v203
  %298 = vmatpush.msra.mxu0 %v184
  %299 = vmatpush.msra.mxu0 %v179
  %300 = vmatpush.msra.mxu0 %v174
  %301 = vmatmul.f32.gmra.mxu0 %v52
  %v302 = vpop.f32.mrf.mxu0
  %v303 = vadd.f32 0.0, %v302
  %304 = vdwg.mxu0
  %v305 = vmax.f32 %v88, %v223
  %v306 = vmax.f32 %v108, %v243
  %v307 = vmax.f32 %v128, %v263
  %v308 = vmax.f32 %v148, %v283
  %v309 = vmax.f32 %v168, %v303
  %v310 = vld [vmem:[%s2] sm:$0xff]
  %v311 = vld [vmem:[%s2 + $0x8] sm:$0xff]
  %v312 = vld [vmem:[%s2 + $0x10] sm:$0xff]
  %v313 = vld [vmem:[%s2 + $0x18] sm:$0xff]
  %v314 = vld [vmem:[%s2 + $0x20] sm:$0xff]
  %v315 = vld [vmem:[%s2 + $0x28] sm:$0xff]
  %v316 = vld [vmem:[%s2 + $0x30] sm:$0xff]
  %v317 = vld [vmem:[%s2 + $0x38] sm:$0xff]
  %v318 = vld [vmem:[%s2 + $0x40] sm:$0xff]
  %v319 = vld [vmem:[%s2 + $0x48] sm:$0xff]
  %v320 = vld [vmem:[%s2 + $0x50] sm:$0xff]
  %v321 = vld [vmem:[%s2 + $0x58] sm:$0xff]
  %v322 = vld [vmem:[%s2 + $0x60] sm:$0xff]
  %v323 = vld [vmem:[%s2 + $0x68] sm:$0xff]
  %v324 = vld [vmem:[%s2 + $0x70] sm:$0xff]
  %v325 = vld [vmem:[%s2 + $0x78] sm:$0x1]
  %v326 = vld [vmem:[%s2 + $0x80] sm:$0x1]
  %v327 = vld [vmem:[%s2 + $0x88] sm:$0x1]
  %v328 = vld [vmem:[%s2 + $0x90] sm:$0x1]
  %v329 = vld [vmem:[%s2 + $0x98] sm:$0x1]
  %v331 = vsel %vm54, %v325, 0
  %v334 = vsel %vm54, %v326, 0
  %v337 = vsel %vm54, %v327, 0
  %v340 = vsel %vm54, %v328, 0
  %v343 = vsel %vm54, %v329, 0
  %345 = vmatpush.msra.mxu0 0.0
  %346 = vmatpush.msra.mxu0 0.0
  %347 = vmatpush.msra.mxu0 0.0
  %348 = vmatpush.msra.mxu0 0.0
  %349 = vmatpush.msra.mxu0 0.0
  %350 = vmatpush.msra.mxu0 0.0
  %351 = vmatpush.msra.mxu0 0.0
  %352 = vmatpush.msra.mxu0 0.0
  %353 = vmatpush.msra.mxu0 0.0
  %354 = vmatpush.msra.mxu0 0.0
  %355 = vmatpush.msra.mxu0 0.0
  %356 = vmatpush.msra.mxu0 0.0
  %357 = vmatpush.msra.mxu0 %v331
  %358 = vmatpush.msra.mxu0 %v320
  %359 = vmatpush.msra.mxu0 %v315
  %360 = vmatpush.msra.mxu0 %v310
  %361 = vmatmul.f32.gmra.mxu0 %v52
  %v362 = vpop.f32.mrf.mxu0
  %v363 = vadd.f32 0.0, %v362
  %364 = vdwg.mxu0
  %365 = vmatpush.msra.mxu0 0.0
  %366 = vmatpush.msra.mxu0 0.0
  %367 = vmatpush.msra.mxu0 0.0
  %368 = vmatpush.msra.mxu0 0.0
  %369 = vmatpush.msra.mxu0 0.0
  %370 = vmatpush.msra.mxu0 0.0
  %371 = vmatpush.msra.mxu0 0.0
  %372 = vmatpush.msra.mxu0 0.0
  %373 = vmatpush.msra.mxu0 0.0
  %374 = vmatpush.msra.mxu0 0.0
  %375 = vmatpush.msra.mxu0 0.0
  %376 = vmatpush.msra.mxu0 0.0
  %377 = vmatpush.msra.mxu0 %v334
  %378 = vmatpush.msra.mxu0 %v321
  %379 = vmatpush.msra.mxu0 %v316
  %380 = vmatpush.msra.mxu0 %v311
  %381 = vmatmul.f32.gmra.mxu0 %v52
  %v382 = vpop.f32.mrf.mxu0
  %v383 = vadd.f32 0.0, %v382
  %384 = vdwg.mxu0
  %385 = vmatpush.msra.mxu0 0.0
  %386 = vmatpush.msra.mxu0 0.0
  %387 = vmatpush.msra.mxu0 0.0
  %388 = vmatpush.msra.mxu0 0.0
  %389 = vmatpush.msra.mxu0 0.0
  %390 = vmatpush.msra.mxu0 0.0
  %391 = vmatpush.msra.mxu0 0.0
  %392 = vmatpush.msra.mxu0 0.0
  %393 = vmatpush.msra.mxu0 0.0
  %394 = vmatpush.msra.mxu0 0.0
  %395 = vmatpush.msra.mxu0 0.0
  %396 = vmatpush.msra.mxu0 0.0
  %397 = vmatpush.msra.mxu0 %v337
  %398 = vmatpush.msra.mxu0 %v322
  %399 = vmatpush.msra.mxu0 %v317
  %400 = vmatpush.msra.mxu0 %v312
  %401 = vmatmul.f32.gmra.mxu0 %v52
  %v402 = vpop.f32.mrf.mxu0
  %v403 = vadd.f32 0.0, %v402
  %404 = vdwg.mxu0
  %405 = vmatpush.msra.mxu0 0.0
  %406 = vmatpush.msra.mxu0 0.0
  %407 = vmatpush.msra.mxu0 0.0
  %408 = vmatpush.msra.mxu0 0.0
  %409 = vmatpush.msra.mxu0 0.0
  %410 = vmatpush.msra.mxu0 0.0
  %411 = vmatpush.msra.mxu0 0.0
  %412 = vmatpush.msra.mxu0 0.0
  %413 = vmatpush.msra.mxu0 0.0
  %414 = vmatpush.msra.mxu0 0.0
  %415 = vmatpush.msra.mxu0 0.0
  %416 = vmatpush.msra.mxu0 0.0
  %417 = vmatpush.msra.mxu0 %v340
  %418 = vmatpush.msra.mxu0 %v323
  %419 = vmatpush.msra.mxu0 %v318
  %420 = vmatpush.msra.mxu0 %v313
  %421 = vmatmul.f32.gmra.mxu0 %v52
  %v422 = vpop.f32.mrf.mxu0
  %v423 = vadd.f32 0.0, %v422
  %424 = vdwg.mxu0
  %425 = vmatpush.msra.mxu0 0.0
  %426 = vmatpush.msra.mxu0 0.0
  %427 = vmatpush.msra.mxu0 0.0
  %428 = vmatpush.msra.mxu0 0.0
  %429 = vmatpush.msra.mxu0 0.0
  %430 = vmatpush.msra.mxu0 0.0
  %431 = vmatpush.msra.mxu0 0.0
  %432 = vmatpush.msra.mxu0 0.0
  %433 = vmatpush.msra.mxu0 0.0
  %434 = vmatpush.msra.mxu0 0.0
  %435 = vmatpush.msra.mxu0 0.0
  %436 = vmatpush.msra.mxu0 0.0
  %437 = vmatpush.msra.mxu0 %v343
  %438 = vmatpush.msra.mxu0 %v324
  %439 = vmatpush.msra.mxu0 %v319
  %440 = vmatpush.msra.mxu0 %v314
  %441 = vmatmul.f32.gmra.mxu0 %v52
  %v442 = vpop.f32.mrf.mxu0
  %v443 = vadd.f32 0.0, %v442
  %444 = vdwg.mxu0
  %v445 = vmax.f32 %v305, %v363
  %v446 = vmax.f32 %v306, %v383
  %v447 = vmax.f32 %v307, %v403
  %v448 = vmax.f32 %v308, %v423
  %v449 = vmax.f32 %v309, %v443
  %v450 = vld [vmem:[%s3] sm:$0xff]
  %v451 = vld [vmem:[%s3 + $0x8] sm:$0xff]
  %v452 = vld [vmem:[%s3 + $0x10] sm:$0xff]
  %v453 = vld [vmem:[%s3 + $0x18] sm:$0xff]
  %v454 = vld [vmem:[%s3 + $0x20] sm:$0xff]
  %v455 = vld [vmem:[%s3 + $0x28] sm:$0xff]
  %v456 = vld [vmem:[%s3 + $0x30] sm:$0xff]
  %v457 = vld [vmem:[%s3 + $0x38] sm:$0xff]
  %v458 = vld [vmem:[%s3 + $0x40] sm:$0xff]
  %v459 = vld [vmem:[%s3 + $0x48] sm:$0xff]
  %v460 = vld [vmem:[%s3 + $0x50] sm:$0xff]
  %v461 = vld [vmem:[%s3 + $0x58] sm:$0xff]
  %v462 = vld [vmem:[%s3 + $0x60] sm:$0xff]
  %v463 = vld [vmem:[%s3 + $0x68] sm:$0xff]
  %v464 = vld [vmem:[%s3 + $0x70] sm:$0xff]
  %v465 = vld [vmem:[%s3 + $0x78] sm:$0x1]
  %v466 = vld [vmem:[%s3 + $0x80] sm:$0x1]
  %v467 = vld [vmem:[%s3 + $0x88] sm:$0x1]
  %v468 = vld [vmem:[%s3 + $0x90] sm:$0x1]
  %v469 = vld [vmem:[%s3 + $0x98] sm:$0x1]
  %v471 = vsel %vm54, %v465, 0
  %v474 = vsel %vm54, %v466, 0
  %v477 = vsel %vm54, %v467, 0
  %v480 = vsel %vm54, %v468, 0
  %v483 = vsel %vm54, %v469, 0
  %485 = vmatpush.msra.mxu0 0.0
  %486 = vmatpush.msra.mxu0 0.0
  %487 = vmatpush.msra.mxu0 0.0
  %488 = vmatpush.msra.mxu0 0.0
  %489 = vmatpush.msra.mxu0 0.0
  %490 = vmatpush.msra.mxu0 0.0
  %491 = vmatpush.msra.mxu0 0.0
  %492 = vmatpush.msra.mxu0 0.0
  %493 = vmatpush.msra.mxu0 0.0
  %494 = vmatpush.msra.mxu0 0.0
  %495 = vmatpush.msra.mxu0 0.0
  %496 = vmatpush.msra.mxu0 0.0
  %497 = vmatpush.msra.mxu0 %v471
  %498 = vmatpush.msra.mxu0 %v460
  %499 = vmatpush.msra.mxu0 %v455
  %500 = vmatpush.msra.mxu0 %v450
  %501 = vmatmul.f32.gmra.mxu0 %v52
  %v502 = vpop.f32.mrf.mxu0
  %v503 = vadd.f32 0.0, %v502
  %504 = vdwg.mxu0
  %505 = vmatpush.msra.mxu0 0.0
  %506 = vmatpush.msra.mxu0 0.0
  %507 = vmatpush.msra.mxu0 0.0
  %508 = vmatpush.msra.mxu0 0.0
  %509 = vmatpush.msra.mxu0 0.0
  %510 = vmatpush.msra.mxu0 0.0
  %511 = vmatpush.msra.mxu0 0.0
  %512 = vmatpush.msra.mxu0 0.0
  %513 = vmatpush.msra.mxu0 0.0
  %514 = vmatpush.msra.mxu0 0.0
  %515 = vmatpush.msra.mxu0 0.0
  %516 = vmatpush.msra.mxu0 0.0
  %517 = vmatpush.msra.mxu0 %v474
  %518 = vmatpush.msra.mxu0 %v461
  %519 = vmatpush.msra.mxu0 %v456
  %520 = vmatpush.msra.mxu0 %v451
  %521 = vmatmul.f32.gmra.mxu0 %v52
  %v522 = vpop.f32.mrf.mxu0
  %v523 = vadd.f32 0.0, %v522
  %524 = vdwg.mxu0
  %525 = vmatpush.msra.mxu0 0.0
  %526 = vmatpush.msra.mxu0 0.0
  %527 = vmatpush.msra.mxu0 0.0
  %528 = vmatpush.msra.mxu0 0.0
  %529 = vmatpush.msra.mxu0 0.0
  %530 = vmatpush.msra.mxu0 0.0
  %531 = vmatpush.msra.mxu0 0.0
  %532 = vmatpush.msra.mxu0 0.0
  %533 = vmatpush.msra.mxu0 0.0
  %534 = vmatpush.msra.mxu0 0.0
  %535 = vmatpush.msra.mxu0 0.0
  %536 = vmatpush.msra.mxu0 0.0
  %537 = vmatpush.msra.mxu0 %v477
  %538 = vmatpush.msra.mxu0 %v462
  %539 = vmatpush.msra.mxu0 %v457
  %540 = vmatpush.msra.mxu0 %v452
  %541 = vmatmul.f32.gmra.mxu0 %v52
  %v542 = vpop.f32.mrf.mxu0
  %v543 = vadd.f32 0.0, %v542
  %544 = vdwg.mxu0
  %545 = vmatpush.msra.mxu0 0.0
  %546 = vmatpush.msra.mxu0 0.0
  %547 = vmatpush.msra.mxu0 0.0
  %548 = vmatpush.msra.mxu0 0.0
  %549 = vmatpush.msra.mxu0 0.0
  %550 = vmatpush.msra.mxu0 0.0
  %551 = vmatpush.msra.mxu0 0.0
  %552 = vmatpush.msra.mxu0 0.0
  %553 = vmatpush.msra.mxu0 0.0
  %554 = vmatpush.msra.mxu0 0.0
  %555 = vmatpush.msra.mxu0 0.0
  %556 = vmatpush.msra.mxu0 0.0
  %557 = vmatpush.msra.mxu0 %v480
  %558 = vmatpush.msra.mxu0 %v463
  %559 = vmatpush.msra.mxu0 %v458
  %560 = vmatpush.msra.mxu0 %v453
  %561 = vmatmul.f32.gmra.mxu0 %v52
  %v562 = vpop.f32.mrf.mxu0
  %v563 = vadd.f32 0.0, %v562
  %564 = vdwg.mxu0
  %565 = vmatpush.msra.mxu0 0.0
  %566 = vmatpush.msra.mxu0 0.0
  %567 = vmatpush.msra.mxu0 0.0
  %568 = vmatpush.msra.mxu0 0.0
  %569 = vmatpush.msra.mxu0 0.0
  %570 = vmatpush.msra.mxu0 0.0
  %571 = vmatpush.msra.mxu0 0.0
  %572 = vmatpush.msra.mxu0 0.0
  %573 = vmatpush.msra.mxu0 0.0
  %574 = vmatpush.msra.mxu0 0.0
  %575 = vmatpush.msra.mxu0 0.0
  %576 = vmatpush.msra.mxu0 0.0
  %577 = vmatpush.msra.mxu0 %v483
  %578 = vmatpush.msra.mxu0 %v464
  %579 = vmatpush.msra.mxu0 %v459
  %580 = vmatpush.msra.mxu0 %v454
  %581 = vmatmul.f32.gmra.mxu0 %v52
  %v582 = vpop.f32.mrf.mxu0
  %v583 = vadd.f32 0.0, %v582
  %584 = vdwg.mxu0
  %v585 = vmax.f32 %v445, %v503
  %v586 = vmax.f32 %v446, %v523
  %v587 = vmax.f32 %v447, %v543
  %v588 = vmax.f32 %v448, %v563
  %v589 = vmax.f32 %v449, %v583
  %v590 = vld [vmem:[%s5] sm:$0x3]
  %592 = vset.pattern.permute.xlu0 0
  %593 = vperm.xlu0 %592, %v590
  %v594 = vpop.permute.xlu0 %593
  %v596 = vadd.f32 %v585, %v594
  %v597 = vadd.f32 %v586, %v594
  %v598 = vadd.f32 %v587, %v594
  %v599 = vadd.f32 %v588, %v594
  %v600 = vadd.f32 %v589, %v594
  %v601 = vtanh.pop %v596
  %v602 = vtanh.pop %v597
  %v603 = vtanh.pop %v598
  %v604 = vtanh.pop %v599
  %v605 = vtanh.pop %v600
  %v606 = vld [vmem:[%s6] sm:$0x3]
  %608 = vset.pattern.permute.xlu0 0
  %609 = vperm.xlu0 %608, %v606
  %v610 = vpop.permute.xlu0 %609
  %v612 = vmul.f32 %v601, %v610
  %v613 = vmul.f32 %v602, %v610
  %v614 = vmul.f32 %v603, %v610
  %v615 = vmul.f32 %v604, %v610
  %v616 = vmul.f32 %v605, %v610
  %v617 = vld [vmem:[%s7] sm:$0x3]
  %619 = vset.pattern.permute.xlu0 0
  %620 = vperm.xlu0 %619, %v617
  %v621 = vpop.permute.xlu0 %620
  %v623 = vadd.f32 %v612, %v621
  %v624 = vadd.f32 %v613, %v621
  %v625 = vadd.f32 %v614, %v621
  %v626 = vadd.f32 %v615, %v621
  %v627 = vadd.f32 %v616, %v621
  %v632 = vrot.slane %v624, 6
  %v633 = vrot.slane %v625, 4
  %v634 = vrot.slane %v626, 2
  %vm635 = vcmask 1041408
  %v636 = vsel %vm635, %v623, %v632
  %vm637 = vcmask 1045508
  %v638 = vsel %vm637, %v633, %v634
  %vm639 = vcmask 1043456
  %v640 = vsel %vm639, %v636, %v638
  %642 = vst [vmem:[%s8] sm:$0xff] %v640
  %vm643 = vcmask 222208
  %644 = vst.msk [vmem:[%s8 + $0x8] sm:$0x3] %vm643, %v627
  // Predicated region
  $region34: #{wavelet_autoencoder_forward.7} parent=0 // pred_check
    _
  $region35: #{wavelet_autoencoder_forward.7} parent=0 // pred_check_branch
    %646 = sbr.rel (0) target = $region37
  $region36: #{wavelet_autoencoder_forward.7} parent=0 // pred_region
    _
  $region37: #{wavelet_autoencoder_forward.7} parent=0 // pred_fallthru
    _
  // Predicated region
  $region38: #{wavelet_autoencoder_forward.7} parent=0 // pred_check
    _
  $region39: #{wavelet_autoencoder_forward.7} parent=0 // pred_check_branch
    %648 = sbr.rel (0) target = $region41
  $region40: #{wavelet_autoencoder_forward.7} parent=0 // pred_region
    _
  $region41: #{wavelet_autoencoder_forward.7} parent=0 // pred_fallthru
    _

// kernel: wavelet_autoencoder_forward.8
$region0: #{wavelet_autoencoder_forward.8}
  #allocation0 [shape = 'u32[]', space=smem, size = 0x4, offset = 0x4, fixed_abs, tag = 'smem constant byte address 0x4 - core index']
  #allocation1 [shape = 'u32[72,128]{1,0:T(1,128)}', space=vmem, size = 0x9000, scoped, tag = 'internal scratch']
  %s0 = inlined_call_operand.vmem [shape: f32[18,192], index: 0, kind: input, shape index: {}]
  %s1 = inlined_call_operand.vmem [shape: f32[18,192], index: 1, kind: input, shape index: {}]
  %s2 = inlined_call_operand.vmem [shape: f32[18,192], index: 2, kind: input, shape index: {}]
  %s3 = inlined_call_operand.vmem [shape: f32[18,192], index: 3, kind: input, shape index: {}]
  %s4 = inlined_call_operand.vmem [shape: f32[4,18], index: 4, kind: input, shape index: {}]
  %s5 = inlined_call_operand.vmem [shape: f32[4,1], index: 5, kind: input, shape index: {}]
  %s6 = inlined_call_operand.vmem [shape: f32[4,1], index: 6, kind: input, shape index: {}]
  %s7 = inlined_call_operand.vmem [shape: f32[4,1], index: 7, kind: input, shape index: {}]
  %s8 = inlined_call_operand.vmem [shape: f32[4,192], index: 8, kind: output, shape index: {}]
  %s9 = sld [smem:[#allocation0]]
  $region42: #{wavelet_autoencoder_forward.8} parent=0
    _
  %s11 = ssub.s32 1, %s9
  %s12 = scalar_select 0, %s11, %s9
  // Predicated region
  $region2: #{wavelet_autoencoder_forward.8} parent=0 // pred_check
    _
  $region3: #{wavelet_autoencoder_forward.8} parent=0 // pred_check_branch
    %14 = sbr.rel (0) target = $region5
  $region4: #{wavelet_autoencoder_forward.8} parent=0 // pred_region
    _
  $region5: #{wavelet_autoencoder_forward.8} parent=0 // pred_fallthru
    _
  // Predicated region
  $region6: #{wavelet_autoencoder_forward.8} parent=0 // pred_check
    _
  $region7: #{wavelet_autoencoder_forward.8} parent=0 // pred_check_branch
    %16 = sbr.rel (0) target = $region9
  $region8: #{wavelet_autoencoder_forward.8} parent=0 // pred_region
    _
  $region9: #{wavelet_autoencoder_forward.8} parent=0 // pred_fallthru
    _
  // Predicated region
  $region10: #{wavelet_autoencoder_forward.8} parent=0 // pred_check
    _
  $region11: #{wavelet_autoencoder_forward.8} parent=0 // pred_check_branch
    %18 = sbr.rel (0) target = $region13
  $region12: #{wavelet_autoencoder_forward.8} parent=0 // pred_region
    _
  $region13: #{wavelet_autoencoder_forward.8} parent=0 // pred_fallthru
    _
  // Predicated region
  $region14: #{wavelet_autoencoder_forward.8} parent=0 // pred_check
    _
  $region15: #{wavelet_autoencoder_forward.8} parent=0 // pred_check_branch
    %20 = sbr.rel (0) target = $region17
  $region16: #{wavelet_autoencoder_forward.8} parent=0 // pred_region
    _
  $region17: #{wavelet_autoencoder_forward.8} parent=0 // pred_fallthru
    _
  // Predicated region
  $region18: #{wavelet_autoencoder_forward.8} parent=0 // pred_check
    _
  $region19: #{wavelet_autoencoder_forward.8} parent=0 // pred_check_branch
    %22 = sbr.rel (0) target = $region21
  $region20: #{wavelet_autoencoder_forward.8} parent=0 // pred_region
    _
  $region21: #{wavelet_autoencoder_forward.8} parent=0 // pred_fallthru
    _
  // Predicated region
  $region22: #{wavelet_autoencoder_forward.8} parent=0 // pred_check
    _
  $region23: #{wavelet_autoencoder_forward.8} parent=0 // pred_check_branch
    %24 = sbr.rel (0) target = $region25
  $region24: #{wavelet_autoencoder_forward.8} parent=0 // pred_region
    _
  $region25: #{wavelet_autoencoder_forward.8} parent=0 // pred_fallthru
    _
  // Predicated region
  $region26: #{wavelet_autoencoder_forward.8} parent=0 // pred_check
    _
  $region27: #{wavelet_autoencoder_forward.8} parent=0 // pred_check_branch
    %26 = sbr.rel (0) target = $region29
  $region28: #{wavelet_autoencoder_forward.8} parent=0 // pred_region
    _
  $region29: #{wavelet_autoencoder_forward.8} parent=0 // pred_fallthru
    _
  // Predicated region
  $region30: #{wavelet_autoencoder_forward.8} parent=0 // pred_check
    _
  $region31: #{wavelet_autoencoder_forward.8} parent=0 // pred_check_branch
    %28 = sbr.rel (0) target = $region33
  $region32: #{wavelet_autoencoder_forward.8} parent=0 // pred_region
    _
  $region33: #{wavelet_autoencoder_forward.8} parent=0 // pred_fallthru
    _
  %v29 = vld [vmem:[%s4] sm:$0xf]
  %v30 = vld [vmem:[%s0] sm:$0xff]
  %v31 = vld [vmem:[%s0 + $0x8] sm:$0xff]
  %v32 = vld [vmem:[%s0 + $0x10] sm:$0xff]
  %v33 = vld [vmem:[%s0 + $0x18] sm:$0xff]
  %v34 = vld [vmem:[%s0 + $0x20] sm:$0x3]
  %v35 = vld [vmem:[%s0 + $0x28] sm:$0x3]
  %vm36 = vcmask 146432
  %v38 = vsel %vm36, %v29, 0
  %vm40 = vcmask 1041408
  %v42 = vsel %vm40, %v34, 0
  %v45 = vsel %vm40, %v35, 0
  %47 = vmatpush.msra.mxu0 0.0
  %48 = vmatpush.msra.mxu0 0.0
  %49 = vmatpush.msra.mxu0 0.0
  %50 = vmatpush.msra.mxu0 0.0
  %51 = vmatpush.msra.mxu0 0.0
  %52 = vmatpush.msra.mxu0 0.0
  %53 = vmatpush.msra.mxu0 0.0
  %54 = vmatpush.msra.mxu0 0.0
  %55 = vmatpush.msra.mxu0 0.0
  %56 = vmatpush.msra.mxu0 0.0
  %57 = vmatpush.msra.mxu0 0.0
  %58 = vmatpush.msra.mxu0 0.0
  %59 = vmatpush.msra.mxu0 0.0
  %60 = vmatpush.msra.mxu0 %v42
  %61 = vmatpush.msra.mxu0 %v32
  %62 = vmatpush.msra.mxu0 %v30
  %63 = vmatmul.f32.gmra.mxu0 %v38
  %v64 = vpop.f32.mrf.mxu0
  %v65 = vadd.f32 0.0, %v64
  %66 = vdwg.mxu0
  %67 = vmatpush.msra.mxu0 0.0
  %68 = vmatpush.msra.mxu0 0.0
  %69 = vmatpush.msra.mxu0 0.0
  %70 = vmatpush.msra.mxu0 0.0
  %71 = vmatpush.msra.mxu0 0.0
  %72 = vmatpush.msra.mxu0 0.0
  %73 = vmatpush.msra.mxu0 0.0
  %74 = vmatpush.msra.mxu0 0.0
  %75 = vmatpush.msra.mxu0 0.0
  %76 = vmatpush.msra.mxu0 0.0
  %77 = vmatpush.msra.mxu0 0.0
  %78 = vmatpush.msra.mxu0 0.0
  %79 = vmatpush.msra.mxu0 0.0
  %80 = vmatpush.msra.mxu0 %v45
  %81 = vmatpush.msra.mxu0 %v33
  %82 = vmatpush.msra.mxu0 %v31
  %83 = vmatmul.f32.gmra.mxu0 %v38
  %v84 = vpop.f32.mrf.mxu0
  %v85 = vadd.f32 0.0, %v84
  %86 = vdwg.mxu0
  %v87 = vld [vmem:[%s1] sm:$0xff]
  %v88 = vld [vmem:[%s1 + $0x8] sm:$0xff]
  %v89 = vld [vmem:[%s1 + $0x10] sm:$0xff]
  %v90 = vld [vmem:[%s1 + $0x18] sm:$0xff]
  %v91 = vld [vmem:[%s1 + $0x20] sm:$0x3]
  %v92 = vld [vmem:[%s1 + $0x28] sm:$0x3]
  %v94 = vsel %vm40, %v91, 0
  %v97 = vsel %vm40, %v92, 0
  %99 = vmatpush.msra.mxu0 0.0
  %100 = vmatpush.msra.mxu0 0.0
  %101 = vmatpush.msra.mxu0 0.0
  %102 = vmatpush.msra.mxu0 0.0
  %103 = vmatpush.msra.mxu0 0.0
  %104 = vmatpush.msra.mxu0 0.0
  %105 = vmatpush.msra.mxu0 0.0
  %106 = vmatpush.msra.mxu0 0.0
  %107 = vmatpush.msra.mxu0 0.0
  %108 = vmatpush.msra.mxu0 0.0
  %109 = vmatpush.msra.mxu0 0.0
  %110 = vmatpush.msra.mxu0 0.0
  %111 = vmatpush.msra.mxu0 0.0
  %112 = vmatpush.msra.mxu0 %v94
  %113 = vmatpush.msra.mxu0 %v89
  %114 = vmatpush.msra.mxu0 %v87
  %115 = vmatmul.f32.gmra.mxu0 %v38
  %v116 = vpop.f32.mrf.mxu0
  %v117 = vadd.f32 0.0, %v116
  %118 = vdwg.mxu0
  %119 = vmatpush.msra.mxu0 0.0
  %120 = vmatpush.msra.mxu0 0.0
  %121 = vmatpush.msra.mxu0 0.0
  %122 = vmatpush.msra.mxu0 0.0
  %123 = vmatpush.msra.mxu0 0.0
  %124 = vmatpush.msra.mxu0 0.0
  %125 = vmatpush.msra.mxu0 0.0
  %126 = vmatpush.msra.mxu0 0.0
  %127 = vmatpush.msra.mxu0 0.0
  %128 = vmatpush.msra.mxu0 0.0
  %129 = vmatpush.msra.mxu0 0.0
  %130 = vmatpush.msra.mxu0 0.0
  %131 = vmatpush.msra.mxu0 0.0
  %132 = vmatpush.msra.mxu0 %v97
  %133 = vmatpush.msra.mxu0 %v90
  %134 = vmatpush.msra.mxu0 %v88
  %135 = vmatmul.f32.gmra.mxu0 %v38
  %v136 = vpop.f32.mrf.mxu0
  %v137 = vadd.f32 0.0, %v136
  %138 = vdwg.mxu0
  %v139 = vmax.f32 %v65, %v117
  %v140 = vmax.f32 %v85, %v137
  %v141 = vld [vmem:[%s2] sm:$0xff]
  %v142 = vld [vmem:[%s2 + $0x8] sm:$0xff]
  %v143 = vld [vmem:[%s2 + $0x10] sm:$0xff]
  %v144 = vld [vmem:[%s2 + $0x18] sm:$0xff]
  %v145 = vld [vmem:[%s2 + $0x20] sm:$0x3]
  %v146 = vld [vmem:[%s2 + $0x28] sm:$0x3]
  %v148 = vsel %vm40, %v145, 0
  %v151 = vsel %vm40, %v146, 0
  %153 = vmatpush.msra.mxu0 0.0
  %154 = vmatpush.msra.mxu0 0.0
  %155 = vmatpush.msra.mxu0 0.0
  %156 = vmatpush.msra.mxu0 0.0
  %157 = vmatpush.msra.mxu0 0.0
  %158 = vmatpush.msra.mxu0 0.0
  %159 = vmatpush.msra.mxu0 0.0
  %160 = vmatpush.msra.mxu0 0.0
  %161 = vmatpush.msra.mxu0 0.0
  %162 = vmatpush.msra.mxu0 0.0
  %163 = vmatpush.msra.mxu0 0.0
  %164 = vmatpush.msra.mxu0 0.0
  %165 = vmatpush.msra.mxu0 0.0
  %166 = vmatpush.msra.mxu0 %v148
  %167 = vmatpush.msra.mxu0 %v143
  %168 = vmatpush.msra.mxu0 %v141
  %169 = vmatmul.f32.gmra.mxu0 %v38
  %v170 = vpop.f32.mrf.mxu0
  %v171 = vadd.f32 0.0, %v170
  %172 = vdwg.mxu0
  %173 = vmatpush.msra.mxu0 0.0
  %174 = vmatpush.msra.mxu0 0.0
  %175 = vmatpush.msra.mxu0 0.0
  %176 = vmatpush.msra.mxu0 0.0
  %177 = vmatpush.msra.mxu0 0.0
  %178 = vmatpush.msra.mxu0 0.0
  %179 = vmatpush.msra.mxu0 0.0
  %180 = vmatpush.msra.mxu0 0.0
  %181 = vmatpush.msra.mxu0 0.0
  %182 = vmatpush.msra.mxu0 0.0
  %183 = vmatpush.msra.mxu0 0.0
  %184 = vmatpush.msra.mxu0 0.0
  %185 = vmatpush.msra.mxu0 0.0
  %186 = vmatpush.msra.mxu0 %v151
  %187 = vmatpush.msra.mxu0 %v144
  %188 = vmatpush.msra.mxu0 %v142
  %189 = vmatmul.f32.gmra.mxu0 %v38
  %v190 = vpop.f32.mrf.mxu0
  %v191 = vadd.f32 0.0, %v190
  %192 = vdwg.mxu0
  %v193 = vmax.f32 %v139, %v171
  %v194 = vmax.f32 %v140, %v191
  %v195 = vld [vmem:[%s3] sm:$0xff]
  %v196 = vld [vmem:[%s3 + $0x8] sm:$0xff]
  %v197 = vld [vmem:[%s3 + $0x10] sm:$0xff]
  %v198 = vld [vmem:[%s3 + $0x18] sm:$0xff]
  %v199 = vld [vmem:[%s3 + $0x20] sm:$0x3]
  %v200 = vld [vmem:[%s3 + $0x28] sm:$0x3]
  %v202 = vsel %vm40, %v199, 0
  %v205 = vsel %vm40, %v200, 0
  %207 = vmatpush.msra.mxu0 0.0
  %208 = vmatpush.msra.mxu0 0.0
  %209 = vmatpush.msra.mxu0 0.0
  %210 = vmatpush.msra.mxu0 0.0
  %211 = vmatpush.msra.mxu0 0.0
  %212 = vmatpush.msra.mxu0 0.0
  %213 = vmatpush.msra.mxu0 0.0
  %214 = vmatpush.msra.mxu0 0.0
  %215 = vmatpush.msra.mxu0 0.0
  %216 = vmatpush.msra.mxu0 0.0
  %217 = vmatpush.msra.mxu0 0.0
  %218 = vmatpush.msra.mxu0 0.0
  %219 = vmatpush.msra.mxu0 0.0
  %220 = vmatpush.msra.mxu0 %v202
  %221 = vmatpush.msra.mxu0 %v197
  %222 = vmatpush.msra.mxu0 %v195
  %223 = vmatmul.f32.gmra.mxu0 %v38
  %v224 = vpop.f32.mrf.mxu0
  %v225 = vadd.f32 0.0, %v224
  %226 = vdwg.mxu0
  %227 = vmatpush.msra.mxu0 0.0
  %228 = vmatpush.msra.mxu0 0.0
  %229 = vmatpush.msra.mxu0 0.0
  %230 = vmatpush.msra.mxu0 0.0
  %231 = vmatpush.msra.mxu0 0.0
  %232 = vmatpush.msra.mxu0 0.0
  %233 = vmatpush.msra.mxu0 0.0
  %234 = vmatpush.msra.mxu0 0.0
  %235 = vmatpush.msra.mxu0 0.0
  %236 = vmatpush.msra.mxu0 0.0
  %237 = vmatpush.msra.mxu0 0.0
  %238 = vmatpush.msra.mxu0 0.0
  %239 = vmatpush.msra.mxu0 0.0
  %240 = vmatpush.msra.mxu0 %v205
  %241 = vmatpush.msra.mxu0 %v198
  %242 = vmatpush.msra.mxu0 %v196
  %243 = vmatmul.f32.gmra.mxu0 %v38
  %v244 = vpop.f32.mrf.mxu0
  %v245 = vadd.f32 0.0, %v244
  %246 = vdwg.mxu0
  %v247 = vmax.f32 %v193, %v225
  %v248 = vmax.f32 %v194, %v245
  %v249 = vld [vmem:[%s5] sm:$0xf]
  %251 = vset.pattern.permute.xlu0 0
  %252 = vperm.xlu0 %251, %v249
  %v253 = vpop.permute.xlu0 %252
  %v255 = vadd.f32 %v247, %v253
  %v256 = vadd.f32 %v248, %v253
  %v257 = vmax.f32 %v255, 0.0
  %v258 = vmax.f32 %v256, 0.0
  %v259 = vld [vmem:[%s6] sm:$0xf]
  %261 = vset.pattern.permute.xlu0 0
  %262 = vperm.xlu0 %261, %v259
  %v263 = vpop.permute.xlu0 %262
  %v265 = vmul.f32 %v257, %v263
  %v266 = vmul.f32 %v258, %v263
  %v267 = vld [vmem:[%s7] sm:$0xf]
  %269 = vset.pattern.permute.xlu0 0
  %270 = vperm.xlu0 %269, %v267
  %v271 = vpop.permute.xlu0 %270
  %v273 = vadd.f32 %v265, %v271
  %v274 = vadd.f32 %v266, %v271
  %v277 = vrot.slane %v274, 4
  %vm278 = vcmask 1043456
  %v279 = vsel %vm278, %v273, %v277
  %vm281 = vcmask 523268
  %vm282 = vmor %vm281, %vm278
  %283 = vst.msk [vmem:[%s8] sm:$0xff] %vm282, %v279
  // Predicated region
  $region34: #{wavelet_autoencoder_forward.8} parent=0 // pred_check
    _
  $region35: #{wavelet_autoencoder_forward.8} parent=0 // pred_check_branch
    %285 = sbr.rel (0) target = $region37
  $region36: #{wavelet_autoencoder_forward.8} parent=0 // pred_region
    _
  $region37: #{wavelet_autoencoder_forward.8} parent=0 // pred_fallthru
    _
  // Predicated region
  $region38: #{wavelet_autoencoder_forward.8} parent=0 // pred_check
    _
  $region39: #{wavelet_autoencoder_forward.8} parent=0 // pred_check_branch
    %287 = sbr.rel (0) target = $region41
  $region40: #{wavelet_autoencoder_forward.8} parent=0 // pred_region
    _
  $region41: #{wavelet_autoencoder_forward.8} parent=0 // pred_fallthru
    _

// kernel: wavelet_autoencoder_forward.9
$region0: #{wavelet_autoencoder_forward.9}
  #allocation0 [shape = 'u32[]', space=smem, size = 0x4, offset = 0x4, fixed_abs, tag = 'smem constant byte address 0x4 - core index']
  #allocation1 [shape = 'u32[72,128]{1,0:T(1,128)}', space=vmem, size = 0x9000, scoped, tag = 'internal scratch']
  %s0 = inlined_call_operand.vmem [shape: f32[36,54], index: 0, kind: input, shape index: {}]
  %s1 = inlined_call_operand.vmem [shape: f32[36,54], index: 1, kind: input, shape index: {}]
  %s2 = inlined_call_operand.vmem [shape: f32[36,54], index: 2, kind: input, shape index: {}]
  %s3 = inlined_call_operand.vmem [shape: f32[36,54], index: 3, kind: input, shape index: {}]
  %s4 = inlined_call_operand.vmem [shape: f32[8,36], index: 4, kind: input, shape index: {}]
  %s5 = inlined_call_operand.vmem [shape: f32[8,1], index: 5, kind: input, shape index: {}]
  %s6 = inlined_call_operand.vmem [shape: f32[8,54], index: 6, kind: output, shape index: {}]
  %s7 = sld [smem:[#allocation0]]
  $region34: #{wavelet_autoencoder_forward.9} parent=0
    _
  %s9 = ssub.s32 1, %s7
  %s10 = scalar_select 0, %s9, %s7
  // Predicated region
  $region2: #{wavelet_autoencoder_forward.9} parent=0 // pred_check
    _
  $region3: #{wavelet_autoencoder_forward.9} parent=0 // pred_check_branch
    %12 = sbr.rel (0) target = $region5
  $region4: #{wavelet_autoencoder_forward.9} parent=0 // pred_region
    _
  $region5: #{wavelet_autoencoder_forward.9} parent=0 // pred_fallthru
    _
  // Predicated region
  $region6: #{wavelet_autoencoder_forward.9} parent=0 // pred_check
    _
  $region7: #{wavelet_autoencoder_forward.9} parent=0 // pred_check_branch
    %14 = sbr.rel (0) target = $region9
  $region8: #{wavelet_autoencoder_forward.9} parent=0 // pred_region
    _
  $region9: #{wavelet_autoencoder_forward.9} parent=0 // pred_fallthru
    _
  // Predicated region
  $region10: #{wavelet_autoencoder_forward.9} parent=0 // pred_check
    _
  $region11: #{wavelet_autoencoder_forward.9} parent=0 // pred_check_branch
    %16 = sbr.rel (0) target = $region13
  $region12: #{wavelet_autoencoder_forward.9} parent=0 // pred_region
    _
  $region13: #{wavelet_autoencoder_forward.9} parent=0 // pred_fallthru
    _
  // Predicated region
  $region14: #{wavelet_autoencoder_forward.9} parent=0 // pred_check
    _
  $region15: #{wavelet_autoencoder_forward.9} parent=0 // pred_check_branch
    %18 = sbr.rel (0) target = $region17
  $region16: #{wavelet_autoencoder_forward.9} parent=0 // pred_region
    _
  $region17: #{wavelet_autoencoder_forward.9} parent=0 // pred_fallthru
    _
  // Predicated region
  $region18: #{wavelet_autoencoder_forward.9} parent=0 // pred_check
    _
  $region19: #{wavelet_autoencoder_forward.9} parent=0 // pred_check_branch
    %20 = sbr.rel (0) target = $region21
  $region20: #{wavelet_autoencoder_forward.9} parent=0 // pred_region
    _
  $region21: #{wavelet_autoencoder_forward.9} parent=0 // pred_fallthru
    _
  // Predicated region
  $region22: #{wavelet_autoencoder_forward.9} parent=0 // pred_check
    _
  $region23: #{wavelet_autoencoder_forward.9} parent=0 // pred_check_branch
    %22 = sbr.rel (0) target = $region25
  $region24: #{wavelet_autoencoder_forward.9} parent=0 // pred_region
    _
  $region25: #{wavelet_autoencoder_forward.9} parent=0 // pred_fallthru
    _
  %v23 = vld [vmem:[%s4] sm:$0xff]
  %v24 = vld [vmem:[%s0] sm:$0xff]
  %v25 = vld [vmem:[%s0 + $0x8] sm:$0xff]
  %v26 = vld [vmem:[%s0 + $0x10] sm:$0xff]
  %v27 = vld [vmem:[%s0 + $0x18] sm:$0xff]
  %v28 = vld [vmem:[%s0 + $0x20] sm:$0xf]
  %vm29 = vcmask 293888
  %v31 = vsel %vm29, %v23, 0
  %vm33 = vcmask 1043456
  %v35 = vsel %vm33, %v28, 0
  %37 = vmatpush.msra.mxu0 0.0
  %38 = vmatpush.msra.mxu0 0.0
  %39 = vmatpush.msra.mxu0 0.0
  %40 = vmatpush.msra.mxu0 0.0
  %41 = vmatpush.msra.mxu0 0.0
  %42 = vmatpush.msra.mxu0 0.0
  %43 = vmatpush.msra.mxu0 0.0
  %44 = vmatpush.msra.mxu0 0.0
  %45 = vmatpush.msra.mxu0 0.0
  %46 = vmatpush.msra.mxu0 0.0
  %47 = vmatpush.msra.mxu0 0.0
  %48 = vmatpush.msra.mxu0 %v35
  %49 = vmatpush.msra.mxu0 %v27
  %50 = vmatpush.msra.mxu0 %v26
  %51 = vmatpush.msra.mxu0 %v25
  %52 = vmatpush.msra.mxu0 %v24
  %53 = vmatmul.f32.gmra.mxu0 %v31
  %v54 = vpop.f32.mrf.mxu0
  %v55 = vadd.f32 0.0, %v54
  %56 = vdwg.mxu0
  %v57 = vld [vmem:[%s1] sm:$0xff]
  %v58 = vld [vmem:[%s1 + $0x8] sm:$0xff]
  %v59 = vld [vmem:[%s1 + $0x10] sm:$0xff]
  %v60 = vld [vmem:[%s1 + $0x18] sm:$0xff]
  %v61 = vld [vmem:[%s1 + $0x20] sm:$0xf]
  %v63 = vsel %vm33, %v61, 0
  %65 = vmatpush.msra.mxu0 0.0
  %66 = vmatpush.msra.mxu0 0.0
  %67 = vmatpush.msra.mxu0 0.0
  %68 = vmatpush.msra.mxu0 0.0
  %69 = vmatpush.msra.mxu0 0.0
  %70 = vmatpush.msra.mxu0 0.0
  %71 = vmatpush.msra.mxu0 0.0
  %72 = vmatpush.msra.mxu0 0.0
  %73 = vmatpush.msra.mxu0 0.0
  %74 = vmatpush.msra.mxu0 0.0
  %75 = vmatpush.msra.mxu0 0.0
  %76 = vmatpush.msra.mxu0 %v63
  %77 = vmatpush.msra.mxu0 %v60
  %78 = vmatpush.msra.mxu0 %v59
  %79 = vmatpush.msra.mxu0 %v58
  %80 = vmatpush.msra.mxu0 %v57
  %81 = vmatmul.f32.gmra.mxu0 %v31
  %v82 = vpop.f32.mrf.mxu0
  %v83 = vadd.f32 0.0, %v82
  %84 = vdwg.mxu0
  %v85 = vmax.f32 %v55, %v83
  %v86 = vld [vmem:[%s2] sm:$0xff]
  %v87 = vld [vmem:[%s2 + $0x8] sm:$0xff]
  %v88 = vld [vmem:[%s2 + $0x10] sm:$0xff]
  %v89 = vld [vmem:[%s2 + $0x18] sm:$0xff]
  %v90 = vld [vmem:[%s2 + $0x20] sm:$0xf]
  %v92 = vsel %vm33, %v90, 0
  %94 = vmatpush.msra.mxu0 0.0
  %95 = vmatpush.msra.mxu0 0.0
  %96 = vmatpush.msra.mxu0 0.0
  %97 = vmatpush.msra.mxu0 0.0
  %98 = vmatpush.msra.mxu0 0.0
  %99 = vmatpush.msra.mxu0 0.0
  %100 = vmatpush.msra.mxu0 0.0
  %101 = vmatpush.msra.mxu0 0.0
  %102 = vmatpush.msra.mxu0 0.0
  %103 = vmatpush.msra.mxu0 0.0
  %104 = vmatpush.msra.mxu0 0.0
  %105 = vmatpush.msra.mxu0 %v92
  %106 = vmatpush.msra.mxu0 %v89
  %107 = vmatpush.msra.mxu0 %v88
  %108 = vmatpush.msra.mxu0 %v87
  %109 = vmatpush.msra.mxu0 %v86
  %110 = vmatmul.f32.gmra.mxu0 %v31
  %v111 = vpop.f32.mrf.mxu0
  %v112 = vadd.f32 0.0, %v111
  %113 = vdwg.mxu0
  %v114 = vmax.f32 %v85, %v112
  %v115 = vld [vmem:[%s3] sm:$0xff]
  %v116 = vld [vmem:[%s3 + $0x8] sm:$0xff]
  %v117 = vld [vmem:[%s3 + $0x10] sm:$0xff]
  %v118 = vld [vmem:[%s3 + $0x18] sm:$0xff]
  %v119 = vld [vmem:[%s3 + $0x20] sm:$0xf]
  %v121 = vsel %vm33, %v119, 0
  %123 = vmatpush.msra.mxu0 0.0
  %124 = vmatpush.msra.mxu0 0.0
  %125 = vmatpush.msra.mxu0 0.0
  %126 = vmatpush.msra.mxu0 0.0
  %127 = vmatpush.msra.mxu0 0.0
  %128 = vmatpush.msra.mxu0 0.0
  %129 = vmatpush.msra.mxu0 0.0
  %130 = vmatpush.msra.mxu0 0.0
  %131 = vmatpush.msra.mxu0 0.0
  %132 = vmatpush.msra.mxu0 0.0
  %133 = vmatpush.msra.mxu0 0.0
  %134 = vmatpush.msra.mxu0 %v121
  %135 = vmatpush.msra.mxu0 %v118
  %136 = vmatpush.msra.mxu0 %v117
  %137 = vmatpush.msra.mxu0 %v116
  %138 = vmatpush.msra.mxu0 %v115
  %139 = vmatmul.f32.gmra.mxu0 %v31
  %v140 = vpop.f32.mrf.mxu0
  %v141 = vadd.f32 0.0, %v140
  %142 = vdwg.mxu0
  %v143 = vmax.f32 %v114, %v141
  %v144 = vld [vmem:[%s5] sm:$0xff]
  %146 = vset.pattern.permute.xlu0 0
  %147 = vperm.xlu0 %146, %v144
  %v148 = vpop.permute.xlu0 %147
  %v150 = vadd.f32 %v143, %v148
  %v151 = vtanh.pop %v150
  %vm152 = vcmask 441344
  %153 = vst.msk [vmem:[%s6] sm:$0xff] %vm152, %v151
  // Predicated region
  $region26: #{wavelet_autoencoder_forward.9} parent=0 // pred_check
    _
  $region27: #{wavelet_autoencoder_forward.9} parent=0 // pred_check_branch
    %155 = sbr.rel (0) target = $region29
  $region28: #{wavelet_autoencoder_forward.9} parent=0 // pred_region
    _
  $region29: #{wavelet_autoencoder_forward.9} parent=0 // pred_fallthru
    _
  // Predicated region
  $region30: #{wavelet_autoencoder_forward.9} parent=0 // pred_check
    _
  $region31: #{wavelet_autoencoder_forward.9} parent=0 // pred_check_branch
    %157 = sbr.rel (0) target = $region33
  $region32: #{wavelet_autoencoder_forward.9} parent=0 // pred_region
    _
  $region33: #{wavelet_autoencoder_forward.9} parent=0 // pred_fallthru
    _

// kernel: wavelet_autoencoder_forward.11
$region0: #{wavelet_autoencoder_forward.11}
  #allocation0 [shape = 'u32[]', space=smem, size = 0x4, offset = 0x4, fixed_abs, tag = 'smem constant byte address 0x4 - core index']
  #allocation1 [shape = 'u32[72,128]{1,0:T(1,128)}', space=vmem, size = 0x9000, scoped, tag = 'internal scratch']
  %s0 = inlined_call_operand.vmem [shape: f32[72,56], index: 0, kind: input, shape index: {}]
  %s1 = inlined_call_operand.vmem [shape: f32[4,72], index: 1, kind: input, shape index: {}]
  %s2 = inlined_call_operand.vmem [shape: f32[4,1], index: 2, kind: input, shape index: {}]
  %s3 = inlined_call_operand.vmem [shape: f32[4,56], index: 3, kind: output, shape index: {}]
  %s4 = sld [smem:[#allocation0]]
  $region22: #{wavelet_autoencoder_forward.11} parent=0
    _
  %s6 = ssub.s32 1, %s4
  %s7 = scalar_select 0, %s6, %s4
  // Predicated region
  $region2: #{wavelet_autoencoder_forward.11} parent=0 // pred_check
    _
  $region3: #{wavelet_autoencoder_forward.11} parent=0 // pred_check_branch
    %9 = sbr.rel (0) target = $region5
  $region4: #{wavelet_autoencoder_forward.11} parent=0 // pred_region
    _
  $region5: #{wavelet_autoencoder_forward.11} parent=0 // pred_fallthru
    _
  // Predicated region
  $region6: #{wavelet_autoencoder_forward.11} parent=0 // pred_check
    _
  $region7: #{wavelet_autoencoder_forward.11} parent=0 // pred_check_branch
    %11 = sbr.rel (0) target = $region9
  $region8: #{wavelet_autoencoder_forward.11} parent=0 // pred_region
    _
  $region9: #{wavelet_autoencoder_forward.11} parent=0 // pred_fallthru
    _
  // Predicated region
  $region10: #{wavelet_autoencoder_forward.11} parent=0 // pred_check
    _
  $region11: #{wavelet_autoencoder_forward.11} parent=0 // pred_check_branch
    %13 = sbr.rel (0) target = $region13
  $region12: #{wavelet_autoencoder_forward.11} parent=0 // pred_region
    _
  $region13: #{wavelet_autoencoder_forward.11} parent=0 // pred_fallthru
    _
  %v14 = vld [vmem:[%s1] sm:$0xf]
  %v15 = vld [vmem:[%s0] sm:$0xff]
  %v16 = vld [vmem:[%s0 + $0x8] sm:$0xff]
  %v17 = vld [vmem:[%s0 + $0x10] sm:$0xff]
  %v18 = vld [vmem:[%s0 + $0x18] sm:$0xff]
  %v19 = vld [vmem:[%s0 + $0x20] sm:$0xff]
  %v20 = vld [vmem:[%s0 + $0x28] sm:$0xff]
  %v21 = vld [vmem:[%s0 + $0x30] sm:$0xff]
  %v22 = vld [vmem:[%s0 + $0x38] sm:$0xff]
  %v23 = vld [vmem:[%s0 + $0x40] sm:$0xff]
  %v24 = vld [vmem:[%s2] sm:$0xf]
  %26 = vset.pattern.permute.xlu0 0
  %27 = vperm.xlu0 %26, %v24
  %v28 = vpop.permute.xlu0 %27
  %vm30 = vcmask 588800
  %v32 = vsel %vm30, %v14, 0
  %34 = vmatpush.msra.mxu0 0.0
  %35 = vmatpush.msra.mxu0 0.0
  %36 = vmatpush.msra.mxu0 0.0
  %37 = vmatpush.msra.mxu0 0.0
  %38 = vmatpush.msra.mxu0 0.0
  %39 = vmatpush.msra.mxu0 0.0
  %40 = vmatpush.msra.mxu0 0.0
  %41 = vmatpush.msra.mxu0 %v23
  %42 = vmatpush.msra.mxu0 %v22
  %43 = vmatpush.msra.mxu0 %v21
  %44 = vmatpush.msra.mxu0 %v20
  %45 = vmatpush.msra.mxu0 %v19
  %46 = vmatpush.msra.mxu0 %v18
  %47 = vmatpush.msra.mxu0 %v17
  %48 = vmatpush.msra.mxu0 %v16
  %49 = vmatpush.msra.mxu0 %v15
  %50 = vmatmul.f32.gmra.mxu0 %v32
  %v51 = vpop.f32.mrf.mxu0
  %v52 = vadd.f32 %v28, %v51
  %53 = vdwg.mxu0
  %v54 = vtanh.pop %v52
  %vm55 = vcmask 453632
  %56 = vst.msk [vmem:[%s3] sm:$0xf] %vm55, %v54
  // Predicated region
  $region14: #{wavelet_autoencoder_forward.11} parent=0 // pred_check
    _
  $region15: #{wavelet_autoencoder_forward.11} parent=0 // pred_check_branch
    %58 = sbr.rel (0) target = $region17
  $region16: #{wavelet_autoencoder_forward.11} parent=0 // pred_region
    _
  $region17: #{wavelet_autoencoder_forward.11} parent=0 // pred_fallthru
    _
  // Predicated region
  $region18: #{wavelet_autoencoder_forward.11} parent=0 // pred_check
    _
  $region19: #{wavelet_autoencoder_forward.11} parent=0 // pred_check_branch
    %60 = sbr.rel (0) target = $region21
  $region20: #{wavelet_autoencoder_forward.11} parent=0 // pred_region
    _
  $region21: #{wavelet_autoencoder_forward.11} parent=0 // pred_fallthru
    _

// kernel: wavelet_autoencoder_forward.12
$region0: #{wavelet_autoencoder_forward.12}
  #allocation0 [shape = 'u32[]', space=smem, size = 0x4, offset = 0x4, fixed_abs, tag = 'smem constant byte address 0x4 - core index']
  #allocation1 [shape = 'u32[72,128]{1,0:T(1,128)}', space=vmem, size = 0x9000, scoped, tag = 'internal scratch']
  %s0 = inlined_call_operand.vmem [shape: f32[36,60], index: 0, kind: input, shape index: {}]
  %s1 = inlined_call_operand.vmem [shape: f32[2,36], index: 1, kind: input, shape index: {}]
  %s2 = inlined_call_operand.vmem [shape: f32[2,1], index: 2, kind: input, shape index: {}]
  %s3 = inlined_call_operand.vmem [shape: f32[2,60], index: 3, kind: output, shape index: {}]
  %s4 = sld [smem:[#allocation0]]
  $region22: #{wavelet_autoencoder_forward.12} parent=0
    _
  %s6 = ssub.s32 1, %s4
  %s7 = scalar_select 0, %s6, %s4
  // Predicated region
  $region2: #{wavelet_autoencoder_forward.12} parent=0 // pred_check
    _
  $region3: #{wavelet_autoencoder_forward.12} parent=0 // pred_check_branch
    %9 = sbr.rel (0) target = $region5
  $region4: #{wavelet_autoencoder_forward.12} parent=0 // pred_region
    _
  $region5: #{wavelet_autoencoder_forward.12} parent=0 // pred_fallthru
    _
  // Predicated region
  $region6: #{wavelet_autoencoder_forward.12} parent=0 // pred_check
    _
  $region7: #{wavelet_autoencoder_forward.12} parent=0 // pred_check_branch
    %11 = sbr.rel (0) target = $region9
  $region8: #{wavelet_autoencoder_forward.12} parent=0 // pred_region
    _
  $region9: #{wavelet_autoencoder_forward.12} parent=0 // pred_fallthru
    _
  // Predicated region
  $region10: #{wavelet_autoencoder_forward.12} parent=0 // pred_check
    _
  $region11: #{wavelet_autoencoder_forward.12} parent=0 // pred_check_branch
    %13 = sbr.rel (0) target = $region13
  $region12: #{wavelet_autoencoder_forward.12} parent=0 // pred_region
    _
  $region13: #{wavelet_autoencoder_forward.12} parent=0 // pred_fallthru
    _
  %v14 = vld [vmem:[%s1] sm:$0x3]
  %v15 = vld [vmem:[%s0] sm:$0xff]
  %v16 = vld [vmem:[%s0 + $0x8] sm:$0xff]
  %v17 = vld [vmem:[%s0 + $0x10] sm:$0xff]
  %v18 = vld [vmem:[%s0 + $0x18] sm:$0xff]
  %v19 = vld [vmem:[%s0 + $0x20] sm:$0xf]
  %v20 = vld [vmem:[%s2] sm:$0x3]
  %22 = vset.pattern.permute.xlu0 0
  %23 = vperm.xlu0 %22, %v20
  %v24 = vpop.permute.xlu0 %23
  %vm26 = vcmask 293888
  %v28 = vsel %vm26, %v14, 0
  %vm30 = vcmask 1043456
  %v32 = vsel %vm30, %v19, 0
  %34 = vmatpush.msra.mxu0 0.0
  %35 = vmatpush.msra.mxu0 0.0
  %36 = vmatpush.msra.mxu0 0.0
  %37 = vmatpush.msra.mxu0 0.0
  %38 = vmatpush.msra.mxu0 0.0
  %39 = vmatpush.msra.mxu0 0.0
  %40 = vmatpush.msra.mxu0 0.0
  %41 = vmatpush.msra.mxu0 0.0
  %42 = vmatpush.msra.mxu0 0.0
  %43 = vmatpush.msra.mxu0 0.0
  %44 = vmatpush.msra.mxu0 0.0
  %45 = vmatpush.msra.mxu0 %v32
  %46 = vmatpush.msra.mxu0 %v18
  %47 = vmatpush.msra.mxu0 %v17
  %48 = vmatpush.msra.mxu0 %v16
  %49 = vmatpush.msra.mxu0 %v15
  %50 = vmatmul.f32.gmra.mxu0 %v28
  %v51 = vpop.f32.mrf.mxu0
  %v52 = vadd.f32 %v24, %v51
  %53 = vdwg.mxu0
  %v54 = vtanh.pop %v52
  %vm55 = vcmask 484352
  %56 = vst.msk [vmem:[%s3] sm:$0x3] %vm55, %v54
  // Predicated region
  $region14: #{wavelet_autoencoder_forward.12} parent=0 // pred_check
    _
  $region15: #{wavelet_autoencoder_forward.12} parent=0 // pred_check_branch
    %58 = sbr.rel (0) target = $region17
  $region16: #{wavelet_autoencoder_forward.12} parent=0 // pred_region
    _
  $region17: #{wavelet_autoencoder_forward.12} parent=0 // pred_fallthru
    _
  // Predicated region
  $region18: #{wavelet_autoencoder_forward.12} parent=0 // pred_check
    _
  $region19: #{wavelet_autoencoder_forward.12} parent=0 // pred_check_branch
    %60 = sbr.rel (0) target = $region21
  $region20: #{wavelet_autoencoder_forward.12} parent=0 // pred_region
    _
  $region21: #{wavelet_autoencoder_forward.12} parent=0 // pred_fallthru
    _

// kernel: wavelet_autoencoder_forward.13
$region0: #{wavelet_autoencoder_forward.13}
  #allocation0 [shape = 'u32[]', space=smem, size = 0x4, offset = 0x4, fixed_abs, tag = 'smem constant byte address 0x4 - core index']
  #allocation1 [shape = 'u32[72,128]{1,0:T(1,128)}', space=vmem, size = 0x9000, scoped, tag = 'internal scratch']
  #allocation2 [shape = 'f32[1,1]{1,0:T(1,128)S(1)}', space=vmem, size = 0x200, scoped, tag = 'scoped memory for wavelet_autoencoder_forward.13']
  %s0 = inlined_call_operand.vmem [shape: f32[50,16], index: 0, kind: input, shape index: {}]
  %s1 = inlined_call_operand.vmem [shape: f32[1,50], index: 1, kind: input, shape index: {}]
  %s2 = inlined_call_operand.<no memory space> [shape: f32[1,1], index: 2, kind: input, shape index: {}]
  %s3 = inlined_call_operand.vmem [shape: f32[1,16], index: 3, kind: output, shape index: {}]
  %s4 = sld [smem:[#allocation0]]
  $region22: #{wavelet_autoencoder_forward.13} parent=0
    _
  %s6 = ssub.s32 1, %s4
  %s7 = scalar_select 0, %s6, %s4
  %v8 = vstv %s2
  %9 = vst [vmem:[#allocation2] sm:$0x1] %v8
  // Predicated region
  $region2: #{wavelet_autoencoder_forward.13} parent=0 // pred_check
    _
  $region3: #{wavelet_autoencoder_forward.13} parent=0 // pred_check_branch
    %11 = sbr.rel (0) target = $region5
  $region4: #{wavelet_autoencoder_forward.13} parent=0 // pred_region
    _
  $region5: #{wavelet_autoencoder_forward.13} parent=0 // pred_fallthru
    _
  // Predicated region
  $region6: #{wavelet_autoencoder_forward.13} parent=0 // pred_check
    _
  $region7: #{wavelet_autoencoder_forward.13} parent=0 // pred_check_branch
    %13 = sbr.rel (0) target = $region9
  $region8: #{wavelet_autoencoder_forward.13} parent=0 // pred_region
    _
  $region9: #{wavelet_autoencoder_forward.13} parent=0 // pred_fallthru
    _
  // Predicated region
  $region10: #{wavelet_autoencoder_forward.13} parent=0 // pred_check
    _
  $region11: #{wavelet_autoencoder_forward.13} parent=0 // pred_check_branch
    %15 = sbr.rel (0) target = $region13
  $region12: #{wavelet_autoencoder_forward.13} parent=0 // pred_region
    _
  $region13: #{wavelet_autoencoder_forward.13} parent=0 // pred_fallthru
    _
  %v16 = vld [vmem:[%s1] sm:$0x1]
  %v17 = vld [vmem:[%s0] sm:$0xff]
  %v18 = vld [vmem:[%s0 + $0x8] sm:$0xff]
  %v19 = vld [vmem:[%s0 + $0x10] sm:$0xff]
  %v20 = vld [vmem:[%s0 + $0x18] sm:$0xff]
  %v21 = vld [vmem:[%s0 + $0x20] sm:$0xff]
  %v22 = vld [vmem:[%s0 + $0x28] sm:$0xff]
  %v23 = vld [vmem:[%s0 + $0x30] sm:$0x3]
  %v24 = vld [vmem:[#allocation2] sm:$0x1]
  %26 = vset.pattern.permute.xlu0 0
  %27 = vperm.xlu0 %26, %v24
  %v28 = vpop.permute.xlu0 %27
  %v30 = vperm.slane %v28, 0
  %vm31 = vcmask 408576
  %v33 = vsel %vm31, %v16, 0
  %vm35 = vcmask 1041408
  %v37 = vsel %vm35, %v23, 0
  %39 = vmatpush.msra.mxu0 0.0
  %40 = vmatpush.msra.mxu0 0.0
  %41 = vmatpush.msra.mxu0 0.0
  %42 = vmatpush.msra.mxu0 0.0
  %43 = vmatpush.msra.mxu0 0.0
  %44 = vmatpush.msra.mxu0 0.0
  %45 = vmatpush.msra.mxu0 0.0
  %46 = vmatpush.msra.mxu0 0.0
  %47 = vmatpush.msra.mxu0 0.0
  %48 = vmatpush.msra.mxu0 %v37
  %49 = vmatpush.msra.mxu0 %v22
  %50 = vmatpush.msra.mxu0 %v21
  %51 = vmatpush.msra.mxu0 %v20
  %52 = vmatpush.msra.mxu0 %v19
  %53 = vmatpush.msra.mxu0 %v18
  %54 = vmatpush.msra.mxu0 %v17
  %55 = vmatmul.f32.gmra.mxu0 %v33
  %v56 = vpop.f32.mrf.mxu0
  %v57 = vadd.f32 %v30, %v56
  %58 = vdwg.mxu0
  %vm59 = vcmask 122880
  %60 = vst.msk [vmem:[%s3] sm:$0x1] %vm59, %v57
  // Predicated region
  $region14: #{wavelet_autoencoder_forward.13} parent=0 // pred_check
    _
  $region15: #{wavelet_autoencoder_forward.13} parent=0 // pred_check_branch
    %62 = sbr.rel (0) target = $region17
  $region16: #{wavelet_autoencoder_forward.13} parent=0 // pred_region
    _
  $region17: #{wavelet_autoencoder_forward.13} parent=0 // pred_fallthru
    _
  // Predicated region
  $region18: #{wavelet_autoencoder_forward.13} parent=0 // pred_check
    _
  $region19: #{wavelet_autoencoder_forward.13} parent=0 // pred_check_branch
    %64 = sbr.rel (0) target = $region21
  $region20: #{wavelet_autoencoder_forward.13} parent=0 // pred_region
    _
  $region21: #{wavelet_autoencoder_forward.13} parent=0 // pred_fallthru
    _

// kernel: wavelet_autoencoder_forward.10
$region0: #{wavelet_autoencoder_forward.10}
  #allocation0 [shape = 'u32[]', space=smem, size = 0x4, offset = 0x4, fixed_abs, tag = 'smem constant byte address 0x4 - core index']
  #allocation1 [shape = 'u32[72,128]{1,0:T(1,128)}', space=vmem, size = 0x9000, scoped, tag = 'internal scratch']
  %s0 = inlined_call_operand.vmem [shape: f32[2,216], index: 0, kind: input, shape index: {}]
  %s1 = inlined_call_operand.vmem [shape: f32[216,128], index: 1, kind: input, shape index: {}]
  %s2 = inlined_call_operand.vmem [shape: f32[1,128], index: 2, kind: input, shape index: {}]
  %s3 = inlined_call_operand.vmem [shape: f32[128,3], index: 3, kind: input, shape index: {}]
  %s4 = inlined_call_operand.vmem [shape: f32[1,3], index: 4, kind: input, shape index: {}]
  %s5 = inlined_call_operand.hbm [shape: f32[2,3], index: 5, kind: output, shape index: {}]
  %s6 = sld [smem:[#allocation0]]
  $region30: #{wavelet_autoencoder_forward.10} parent=0
    _
  %s8 = ssub.s32 1, %s6
  %s9 = scalar_select 0, %s8, %s6
  $region1: #{wavelet_autoencoder_forward.10} parent=0
    #allocation2 [shape = 'u8[1024]{0}', space=vmem, size = 0x400, scoped, tag = 'output window, operand 0, single buffered']
    #allocation3 [shape = 's32[1]{0}', space=sflag, size = 0x4, scoped, tag = 'scoped memory for wavelet_autoencoder_forward.10']
    %10 = vsyncpa [#allocation3], 0
    // Predicated region
    $region2: #{wavelet_autoencoder_forward.10} parent=1 // pred_check
      _
    $region3: #{wavelet_autoencoder_forward.10} parent=1 // pred_check_branch
      %12 = sbr.rel (0) target = $region5
    $region4: #{wavelet_autoencoder_forward.10} parent=1 // pred_region
      _
    $region5: #{wavelet_autoencoder_forward.10} parent=1 // pred_fallthru
      _
    // Predicated region
    $region6: #{wavelet_autoencoder_forward.10} parent=1 // pred_check
      _
    $region7: #{wavelet_autoencoder_forward.10} parent=1 // pred_check_branch
      %14 = sbr.rel (0) target = $region9
    $region8: #{wavelet_autoencoder_forward.10} parent=1 // pred_region
      _
    $region9: #{wavelet_autoencoder_forward.10} parent=1 // pred_fallthru
      _
    // Predicated region
    $region10: #{wavelet_autoencoder_forward.10} parent=1 // pred_check
      _
    $region11: #{wavelet_autoencoder_forward.10} parent=1 // pred_check_branch
      %16 = sbr.rel (0) target = $region13
    $region12: #{wavelet_autoencoder_forward.10} parent=1 // pred_region
      _
    $region13: #{wavelet_autoencoder_forward.10} parent=1 // pred_fallthru
      _
    // Predicated region
    $region14: #{wavelet_autoencoder_forward.10} parent=1 // pred_check
      _
    $region15: #{wavelet_autoencoder_forward.10} parent=1 // pred_check_branch
      %18 = sbr.rel (0) target = $region17
    $region16: #{wavelet_autoencoder_forward.10} parent=1 // pred_region
      _
    $region17: #{wavelet_autoencoder_forward.10} parent=1 // pred_fallthru
      _
    // Predicated region
    $region18: #{wavelet_autoencoder_forward.10} parent=1 // pred_check
      _
    $region19: #{wavelet_autoencoder_forward.10} parent=1 // pred_check_branch
      %20 = sbr.rel (0) target = $region21
    $region20: #{wavelet_autoencoder_forward.10} parent=1 // pred_region
      _
    $region21: #{wavelet_autoencoder_forward.10} parent=1 // pred_fallthru
      _
    %v21 = vld [vmem:[%s0] sm:$0xf]
    %v22 = vld [vmem:[%s1] sm:$0xff]
    %v23 = vld [vmem:[%s1 + $0x8] sm:$0xff]
    %v24 = vld [vmem:[%s1 + $0x10] sm:$0xff]
    %v25 = vld [vmem:[%s1 + $0x18] sm:$0xff]
    %v26 = vld [vmem:[%s1 + $0x20] sm:$0xff]
    %v27 = vld [vmem:[%s1 + $0x28] sm:$0xff]
    %v28 = vld [vmem:[%s1 + $0x30] sm:$0xff]
    %v29 = vld [vmem:[%s1 + $0x38] sm:$0xff]
    %v30 = vld [vmem:[%s1 + $0x40] sm:$0xff]
    %v31 = vld [vmem:[%s1 + $0x48] sm:$0xff]
    %v32 = vld [vmem:[%s1 + $0x50] sm:$0xff]
    %v33 = vld [vmem:[%s1 + $0x58] sm:$0xff]
    %v34 = vld [vmem:[%s1 + $0x60] sm:$0xff]
    %v35 = vld [vmem:[%s1 + $0x68] sm:$0xff]
    %v36 = vld [vmem:[%s1 + $0x70] sm:$0xff]
    %v37 = vld [vmem:[%s1 + $0x78] sm:$0xff]
    %v38 = vld [vmem:[%s1 + $0x80] sm:$0xff]
    %v39 = vld [vmem:[%s1 + $0x88] sm:$0xff]
    %v40 = vld [vmem:[%s1 + $0x90] sm:$0xff]
    %v41 = vld [vmem:[%s1 + $0x98] sm:$0xff]
    %v42 = vld [vmem:[%s1 + $0xa0] sm:$0xff]
    %v43 = vld [vmem:[%s1 + $0xa8] sm:$0xff]
    %v44 = vld [vmem:[%s1 + $0xb0] sm:$0xff]
    %v45 = vld [vmem:[%s1 + $0xb8] sm:$0xff]
    %v46 = vld [vmem:[%s1 + $0xc0] sm:$0xff]
    %v47 = vld [vmem:[%s1 + $0xc8] sm:$0xff]
    %v48 = vld [vmem:[%s1 + $0xd0] sm:$0xff]
    %v49 = vld [vmem:[%s2] sm:$0x1]
    %v51 = vperm.slane %v49, 0
    %54 = vst [vmem:[#allocation1] ss:$4 sm:$0xff] %v21
    %v55 = vld.sshfl [vmem:[#allocation1] sm:$0xff pattern:$0x73625140]
    %v56 = vld.sshfl [vmem:[#allocation1 + $0x8] sm:$0xff pattern:$0x73625140]
    %vm58 = vcmask 719872
    %v59 = vsel %vm58, %v56, 0
    %61 = vmatpush.msra.mxu0 %v37
    %62 = vmatpush.msra.mxu0 %v36
    %63 = vmatpush.msra.mxu0 %v35
    %64 = vmatpush.msra.mxu0 %v34
    %65 = vmatpush.msra.mxu0 %v33
    %66 = vmatpush.msra.mxu0 %v32
    %67 = vmatpush.msra.mxu0 %v31
    %68 = vmatpush.msra.mxu0 %v30
    %69 = vmatpush.msra.mxu0 %v29
    %70 = vmatpush.msra.mxu0 %v28
    %71 = vmatpush.msra.mxu0 %v27
    %72 = vmatpush.msra.mxu0 %v26
    %73 = vmatpush.msra.mxu0 %v25
    %74 = vmatpush.msra.mxu0 %v24
    %75 = vmatpush.msra.mxu0 %v23
    %76 = vmatpush.msra.mxu0 %v22
    %77 = vmatmul.f32.gmra.mxu0 %v55
    %v78 = vpop.f32.mrf.mxu0
    %v79 = vadd.f32 %v51, %v78
    %80 = vdwg.mxu0
    %81 = vmatpush.msra.mxu0 0.0
    %82 = vmatpush.msra.mxu0 0.0
    %83 = vmatpush.msra.mxu0 0.0
    %84 = vmatpush.msra.mxu0 0.0
    %85 = vmatpush.msra.mxu0 0.0
    %86 = vmatpush.msra.mxu0 %v48
    %87 = vmatpush.msra.mxu0 %v47
    %88 = vmatpush.msra.mxu0 %v46
    %89 = vmatpush.msra.mxu0 %v45
    %90 = vmatpush.msra.mxu0 %v44
    %91 = vmatpush.msra.mxu0 %v43
    %92 = vmatpush.msra.mxu0 %v42
    %93 = vmatpush.msra.mxu0 %v41
    %94 = vmatpush.msra.mxu0 %v40
    %95 = vmatpush.msra.mxu0 %v39
    %96 = vmatpush.msra.mxu0 %v38
    %97 = vmatmul.f32.gmra.mxu0 %v59
    %v98 = vpop.f32.mrf.mxu0
    %v99 = vadd.f32 %v79, %v98
    %100 = vdwg.mxu0
    %v101 = vmax.f32 %v99, 0.0
    %v102 = vld [vmem:[%s3] sm:$0xff]
    %v103 = vld [vmem:[%s3 + $0x8] sm:$0xff]
    %v104 = vld [vmem:[%s3 + $0x10] sm:$0xff]
    %v105 = vld [vmem:[%s3 + $0x18] sm:$0xff]
    %v106 = vld [vmem:[%s3 + $0x20] sm:$0xff]
    %v107 = vld [vmem:[%s3 + $0x28] sm:$0xff]
    %v108 = vld [vmem:[%s3 + $0x30] sm:$0xff]
    %v109 = vld [vmem:[%s3 + $0x38] sm:$0xff]
    %v110 = vld [vmem:[%s3 + $0x40] sm:$0xff]
    %v111 = vld [vmem:[%s3 + $0x48] sm:$0xff]
    %v112 = vld [vmem:[%s3 + $0x50] sm:$0xff]
    %v113 = vld [vmem:[%s3 + $0x58] sm:$0xff]
    %v114 = vld [vmem:[%s3 + $0x60] sm:$0xff]
    %v115 = vld [vmem:[%s3 + $0x68] sm:$0xff]
    %v116 = vld [vmem:[%s3 + $0x70] sm:$0xff]
    %v117 = vld [vmem:[%s3 + $0x78] sm:$0xff]
    %v118 = vld [vmem:[%s4] sm:$0x1]
    %v120 = vperm.slane %v118, 0
    %122 = vmatpush.msra.mxu0 %v117
    %123 = vmatpush.msra.mxu0 %v116
    %124 = vmatpush.msra.mxu0 %v115
    %125 = vmatpush.msra.mxu0 %v114
    %126 = vmatpush.msra.mxu0 %v113
    %127 = vmatpush.msra.mxu0 %v112
    %128 = vmatpush.msra.mxu0 %v111
    %129 = vmatpush.msra.mxu0 %v110
    %130 = vmatpush.msra.mxu0 %v109
    %131 = vmatpush.msra.mxu0 %v108
    %132 = vmatpush.msra.mxu0 %v107
    %133 = vmatpush.msra.mxu0 %v106
    %134 = vmatpush.msra.mxu0 %v105
    %135 = vmatpush.msra.mxu0 %v104
    %136 = vmatpush.msra.mxu0 %v103
    %137 = vmatpush.msra.mxu0 %v102
    %138 = vmatmul.f32.gmra.mxu0 %v101
    %v139 = vpop.f32.mrf.mxu0
    %v140 = vadd.f32 %v120, %v139
    %141 = vdwg.mxu0
    %vm142 = vcmask 17408
    %v143 = vsel %vm142, %v140, -inf
    %144 = vmax.xlane.f32.xlu0 %v143
    %v145 = vpop.xlane.xlu0 %144
    %v146 = vsub.f32 %v140, %v145
    %v147 = vmul.f32 %v146, 1.442695
    %v148 = vpow.pop %v147
    %v149 = vsel %vm142, %v148, 0.0
    %150 = vadd.xlane.f32.xlu0 %v149
    %v151 = vpop.xlane.xlu0 %150
    %v152 = vlog2.pop %v151
    %v153 = vmul.f32 %v152, 0.6931472
    %v154 = vsub.f32 %v146, %v153
    %155 = vst.msk [vmem:[#allocation2] sm:$0x3] %vm142, %v154
    // Predicated region
    $region22: #{wavelet_autoencoder_forward.10} parent=1 // pred_check
      _
    $region23: #{wavelet_autoencoder_forward.10} parent=1 // pred_check_branch
      %157 = sbr.rel (0) target = $region25
    $region24: #{wavelet_autoencoder_forward.10} parent=1 // pred_region
      %159 = vsyncadd [#allocation3], 0
      %s161 = sshll.u32 [#allocation2], 4
      %s162 = int_to_ptr.vmem [resolvable:$true] %s161
      %s163 = sshll.u32 %s5, 4
      %s164 = int_to_ptr.hbm [resolvable:$true] %s163
      %166 = dma.vmem_to_hbm [thread:$0]  %s162, 32, %s164, [#allocation3]
    $region25: #{wavelet_autoencoder_forward.10} parent=1 // pred_fallthru
      _
    // Predicated region
    $region26: #{wavelet_autoencoder_forward.10} parent=1 // pred_check
      _
    $region27: #{wavelet_autoencoder_forward.10} parent=1 // pred_check_branch
      %168 = sbr.rel (0) target = $region29
    $region28: #{wavelet_autoencoder_forward.10} parent=1 // pred_region
      %170 = dma.done [#allocation3], 32
    $region29: #{wavelet_autoencoder_forward.10} parent=1 // pred_fallthru
      _
    %171 = vsyncpa [#allocation3], 1

</llo_original>
